<compile_context>
chip_gen: v5e
topology: v5e:2x2
jax: 0.10.0
libtpu: 0.0.40
codegen_flags: <defaults>
</compile_context>

<pallas_src>
import functools

import jax
import jax.numpy as jnp
from jax.experimental import pallas as pl
from jax.experimental.pallas import tpu as pltpu


def _round_up(x, m):
    return ((x + m - 1) // m) * m


def _pick_tile(nv, tm_max):
    # Big tiles amortize the ~0.35us/grid-step overhead; cap so the (single) grid axis
    # still has >= 2 steps so it can shard across v7x's two TensorCores on small inputs.
    half = _round_up(max((nv + 1) // 2, 1), 32)
    return max(32, min(tm_max, half))


# -----------------------------------------------------------------------------
# Pallas kernel: DeformBlock per-vertex MLP
#   x   = leaky_relu(fc1([v, normal]), 0.15)
#   h   = leaky_relu(x @ W2a + sum_n cubes_n @ Wloc_n + b, 0.15)
#         (localconv -> localfc -> fc2's x_local branch is fully linear and folded into
#          Wloc_n / b in the wrapper; the int8 dequant scale is folded into Wloc_n too)
#   h   = leaky_relu(fc3(h), 0.15)
#   d   = tanh(fc4(h)) * 0.1
#   out = coord + d                  (coord == feat[:, :3], kept in f32)
# All matmuls: bf16 operands on the MXU, f32 accumulation.
# -----------------------------------------------------------------------------
def _make_deform_kernel(n_scale):
    def kernel(*refs):
        feat_ref = refs[0]
        cube_refs = refs[1:1 + n_scale]
        w1_ref, b1_ref, w2a_ref, b2_ref = refs[1 + n_scale:5 + n_scale]
        wloc_refs = refs[5 + n_scale:5 + 2 * n_scale]
        w3_ref, b3_ref, w4_ref, b4_ref = refs[5 + 2 * n_scale:9 + 2 * n_scale]
        out_ref = refs[9 + 2 * n_scale]

        def lrelu(x):
            return jnp.where(x >= 0, x, 0.15 * x)

        feat = feat_ref[...]                                          # (TM, 6) f32
        x = jnp.dot(feat.astype(jnp.bfloat16), w1_ref[...],
                    preferred_element_type=jnp.float32) + b1_ref[...]
        x = lrelu(x)                                                  # (TM, nc) f32

        h = jnp.dot(x.astype(jnp.bfloat16), w2a_ref[...],
                    preferred_element_type=jnp.float32)               # (TM, 4nc) f32
        for c_ref, wl_ref in zip(cube_refs, wloc_refs):
            cb = c_ref[...].astype(jnp.float32).astype(jnp.bfloat16)  # int8 -> bf16 (VPU)
            h = h + jnp.dot(cb, wl_ref[...],
                            preferred_element_type=jnp.float32)       # bf16 MXU, f32 acc
        h = lrelu(h + b2_ref[...])                                    # (TM, 4nc)

        h = lrelu(jnp.dot(h.astype(jnp.bfloat16), w3_ref[...],
                          preferred_element_type=jnp.float32) + b3_ref[...])  # (TM, 2nc)

        d = jnp.tanh(jnp.dot(h.astype(jnp.bfloat16), w4_ref[...],
                             preferred_element_type=jnp.float32) + b4_ref[...]) * 0.1
        out_ref[...] = feat[:, :3] + d                                # coord + displacement
    return kernel


def deform_mlp_pallas(feat, cubes, cube_scale, p, tm_max=2048):
    """feat: (nv, 6) f32; cubes: list of n_scale (nv, K^3) int8 arrays -> (nv, 3) f32."""
    nv, fdim = feat.shape
    n_scale = len(cubes)
    kcube = cubes[0].shape[1]

    tm = _pick_tile(nv, tm_max)
    grid = pl.cdiv(nv, tm)

    # Fold the fully-linear local path (localconv -> localfc -> fc2's x_local branch has
    # no nonlinearity in between) plus the int8 dequant scale into one weight per level.
    wloc_full = p["wl"] @ p["wlf"] @ p["w2b"]                         # (n_scale*K^3, 4nc)
    bloc = (p["bl"] @ p["wlf"] + p["blf"]) @ p["w2b"]                 # (1, 4nc)
    b2c = p["b2"] + bloc
    wlocs = [(cube_scale * wloc_full[n * kcube:(n + 1) * kcube]).astype(jnp.bfloat16)
             for n in range(n_scale)]

    w1 = p["w1"].astype(jnp.bfloat16)
    w2a = p["w2a"].astype(jnp.bfloat16)
    w3 = p["w3"].astype(jnp.bfloat16)
    w4 = p["w4"].astype(jnp.bfloat16)

    weights = [w1, p["b1"], w2a, b2c] + wlocs + [w3, p["b3"], w4, p["b4"]]

    def vspec(ncols):
        return pl.BlockSpec((tm, ncols), lambda i: (i, 0))

    def wspec(a):
        return pl.BlockSpec(a.shape, lambda i: (0, 0))

    out = pl.pallas_call(
        _make_deform_kernel(n_scale),
        out_shape=jax.ShapeDtypeStruct((nv, 3), jnp.float32),
        grid_spec=pltpu.PrefetchScalarGridSpec(
            num_scalar_prefetch=0,
            grid=(grid,),
            in_specs=[vspec(fdim)] + [vspec(kcube)] * n_scale
                     + [wspec(w) for w in weights],
            out_specs=pl.BlockSpec((tm, 3), lambda i: (i, 0)),
        ),
        compiler_params=pltpu.CompilerParams(
            dimension_semantics=("parallel",),
            vmem_limit_bytes=48 * 1024 * 1024),
    )(feat, *cubes, *weights)
    return out


def deform_mlp_reference(feat, cubes_flat_f32, p):
    """Pure-JAX f32 reference of the DeformBlock MLP (unfused, unquantized)."""
    def lrelu(x):
        return jnp.where(x >= 0, x, 0.15 * x)
    x = lrelu(feat @ p["w1"] + p["b1"])
    xl = cubes_flat_f32 @ p["wl"] + p["bl"]
    xl = xl @ p["wlf"] + p["blf"]
    h = lrelu(x @ p["w2a"] + xl @ p["w2b"] + p["b2"])
    h = lrelu(h @ p["w3"] + p["b3"])
    d = jnp.tanh(h @ p["w4"] + p["b4"]) * 0.1
    return feat[:, :3] + d


# -----------------------------------------------------------------------------
# Plain-JAX glue (data-dependent gather / scatter)
# -----------------------------------------------------------------------------
def compute_normal(v, f):
    """Vertex normals from area-weighted face normals. v:(1,nv,3), f:(1,nf,3)."""
    # TODO(synk): exact compute_normal source not provided with the reference model;
    # standard area-weighted face-normal accumulation + normalization used instead.
    fv = f[0]
    p0 = v[0][fv[:, 0]]
    p1 = v[0][fv[:, 1]]
    p2 = v[0][fv[:, 2]]
    fn = jnp.cross(p1 - p0, p2 - p0)                        # (nf, 3)
    nv = v.shape[1]
    vn = jnp.zeros((nv, 3), v.dtype)
    vn = vn.at[fv[:, 0]].add(fn)
    vn = vn.at[fv[:, 1]].add(fn)
    vn = vn.at[fv[:, 2]].add(fn)
    norm = jnp.sqrt(jnp.sum(vn * vn, axis=-1, keepdims=True))
    vn = vn / jnp.maximum(norm, 1e-12)
    return vn[None]                                         # (1, nv, 3)


def build_pyramid(volume, n_scale):
    """n_scale-level average-pool pyramid of the intensity volume (f32)."""
    vol = volume[0, 0]
    levels = [vol]
    for _ in range(1, n_scale):
        L0, W0, H0 = vol.shape
        # TODO(synk): matches F.avg_pool3d(vol, 2) only for even dims (true here).
        vol = vol.reshape(L0 // 2, 2, W0 // 2, 2, H0 // 2, 2).mean(axis=(1, 3, 5))
        levels.append(vol)
    return levels


def quantize_levels(levels):
    """int8 quantization of the pyramid (shared scale) to halve the dominant HBM stream."""
    amax = jnp.maximum(jnp.max(jnp.abs(levels[0])), 1e-12)  # level-0 max bounds all levels
    scale = amax / 127.0
    q = [jnp.clip(jnp.round(l / scale), -127.0, 127.0).astype(jnp.int8) for l in levels]
    return q, scale


def sample_cubes(v, levels, rescale, lwh_max, pyramid_shape, K=5):
    """Per-level (K,K,K) neighbourhood gather around each vertex.

    Implemented as a vmapped lax.dynamic_slice (one XLA gather with slice_sizes=(K,K,K)
    per level): index traffic is 12 B/vertex/level, and each level's (nv, K^3) output
    feeds the Pallas kernel directly (no concat / pad copy of the cube tensor).
    """
    half = (K - 1) // 2
    out = []
    for n, vol in enumerate(levels):
        idx = jnp.round((v[0] + rescale) * lwh_max / 2 ** (n + 1))
        idx = jnp.maximum(jnp.minimum(idx, pyramid_shape[n] - 3.0), float(half))
        idx = idx.astype(jnp.int32)
        starts = jnp.stack([idx[:, 2], idx[:, 1], idx[:, 0]], axis=1) - half   # (nv, 3)
        cubes = jax.vmap(
            lambda s: jax.lax.dynamic_slice(vol, (s[0], s[1], s[2]), (K, K, K)))(starts)
        out.append(cubes.reshape(cubes.shape[0], -1))                          # (nv, K^3)
    return out


def laplacian_smooth(x, f, lambd=1.0):
    """PyG-style mean aggregation over directed face edges. x:(1,nv,3)."""
    fv = f[0]
    edges = jnp.concatenate([fv[:, [0, 1]], fv[:, [1, 2]], fv[:, [2, 0]]], axis=0)
    src, dst = edges[:, 0], edges[:, 1]
    nv = x.shape[1]
    msg = x[0][src]
    summed = jnp.zeros((nv, 3), x.dtype).at[dst].add(msg)
    cnt = jnp.zeros((nv,), x.dtype).at[dst].add(1.0)
    mean = jnp.where(cnt[:, None] > 0, summed / jnp.maximum(cnt[:, None], 1.0), 0.0)
    out = lambd * mean + (1.0 - lambd) * x[0]
    return out[None]


# -----------------------------------------------------------------------------
# DeformBlock / PialNN forward
# -----------------------------------------------------------------------------
def deform_block_forward(v, f, q_levels, cube_scale, p, consts, K):
    normal = compute_normal(v, f)
    feat = jnp.concatenate([v, normal], axis=2)[0]          # (nv, 6); feat[:, :3] == coord
    cubes = sample_cubes(v, q_levels, consts["rescale"], consts["lwh_max"],
                         consts["pyramid_shape"], K=K)
    new_v = deform_mlp_pallas(feat, cubes, cube_scale, p)
    return new_v[None]                                      # (1, nv, 3)


def pialnn_forward(v, f, volume, params, consts, nc, K, n_scale,
                   n_smooth=1, lambd=1.0):
    # Pyramid built + quantized once per forward and shared by all three DeformBlocks.
    q_levels, cube_scale = quantize_levels(build_pyramid(volume, n_scale))
    x = deform_block_forward(v, f, q_levels, cube_scale, params[0], consts, K)
    x = deform_block_forward(x, f, q_levels, cube_scale, params[1], consts, K)
    x = deform_block_forward(x, f, q_levels, cube_scale, params[2], consts, K)
    for _ in range(n_smooth):
        x = laplacian_smooth(x, f, lambd=lambd)
    return x


# -----------------------------------------------------------------------------
# Deterministic parameter init
# -----------------------------------------------------------------------------
def init_block_params(key, nc, K, n_scale):
    def lin(k, fan_in, fan_out):
        kw, kb = jax.random.split(k)
        scale = 1.0 / jnp.sqrt(fan_in)
        w = jax.random.uniform(kw, (fan_in, fan_out), jnp.float32, -scale, scale)
        b = jax.random.uniform(kb, (1, fan_out), jnp.float32, -scale, scale)
        return w, b

    ks = jax.random.split(key, 6)
    w1, b1 = lin(ks[0], 6, nc)
    wl, bl = lin(ks[1], n_scale * K ** 3, nc)               # Conv3d flattened
    wlf, blf = lin(ks[2], nc, nc)
    w2, b2 = lin(ks[3], 2 * nc, 4 * nc)
    w3, b3 = lin(ks[4], 4 * nc, 2 * nc)
    w4, b4 = lin(ks[5], 2 * nc, 3)
    return dict(w1=w1, b1=b1, wl=wl, bl=bl, wlf=wlf, blf=blf,
                w2a=w2[:nc], w2b=w2[nc:], b2=b2,
                w3=w3, b3=b3, w4=w4, b4=b4)


def make_consts(L, W, H, n_scale):
    lwh_max = float(max(L, W, H))
    rescale = jnp.array([L / lwh_max, W / lwh_max, H / lwh_max], jnp.float32)
    pyramid_shape = jnp.array(
        [[L / 2 ** i, W / 2 ** i, H / 2 ** i] for i in range(n_scale)], jnp.float32)
    return dict(rescale=rescale, lwh_max=lwh_max, pyramid_shape=pyramid_shape)


if __name__ == "__main__":
    nv, nf = 128, 256
    L = W = H = 32
    nc, K, n_scale = 32, 5, 3

    key = jax.random.PRNGKey(0)
    kv, kf, kvol, kp = jax.random.split(key, 4)
    v = jax.random.uniform(kv, (1, nv, 3), jnp.float32, -0.5, 0.5)
    f = jax.random.randint(kf, (1, nf, 3), 0, nv, dtype=jnp.int32)
    volume = jax.random.uniform(kvol, (1, 1, L, W, H), jnp.float32)

    params = [init_block_params(k, nc, K, n_scale)
              for k in jax.random.split(kp, 3)]
    consts = make_consts(L, W, H, n_scale)

    # Correctness spot-check: Pallas MLP (int8 cubes, bf16 MXU, folded local path)
    # vs pure-f32 unquantized reference on block-1 inputs.
    levels = build_pyramid(volume, n_scale)
    q_levels, cube_scale = quantize_levels(levels)
    normal = compute_normal(v, f)
    feat = jnp.concatenate([v, normal], axis=2)[0]
    cubes_q = sample_cubes(v, q_levels, consts["rescale"], consts["lwh_max"],
                           consts["pyramid_shape"], K=K)
    cubes_f = sample_cubes(v, levels, consts["rescale"], consts["lwh_max"],
                           consts["pyramid_shape"], K=K)
    got = deform_mlp_pallas(feat, cubes_q, cube_scale, params[0])
    ref = deform_mlp_reference(feat, jnp.concatenate(cubes_f, axis=1), params[0])
    jax.block_until_ready((got, ref))
    assert float(jnp.max(jnp.abs(got - ref))) < 2e-2

    fwd = jax.jit(functools.partial(pialnn_forward, nc=nc, K=K, n_scale=n_scale,
                                    n_smooth=1, lambd=1.0))
    out = fwd(v, f, volume, params, consts)
    jax.block_until_ready(out)
    assert out.shape == (1, nv, 3)
    assert bool(jnp.all(jnp.isfinite(out)))
    print("KERNEL_OK")
</pallas_src>

<mosaic_0001>
module attributes {stable_mosaic.version = 11 : i64} {
  func.func @kernel(%arg0: i32, %arg1: memref<64x6xf32, #tpu.memory_space<vmem>>, %arg2: memref<64x125xi8, #tpu.memory_space<vmem>>, %arg3: memref<64x125xi8, #tpu.memory_space<vmem>>, %arg4: memref<64x125xi8, #tpu.memory_space<vmem>>, %arg5: memref<6x32xbf16, #tpu.memory_space<vmem>>, %arg6: memref<1x32xf32, #tpu.memory_space<vmem>>, %arg7: memref<32x128xbf16, #tpu.memory_space<vmem>>, %arg8: memref<1x128xf32, #tpu.memory_space<vmem>>, %arg9: memref<125x128xbf16, #tpu.memory_space<vmem>>, %arg10: memref<125x128xbf16, #tpu.memory_space<vmem>>, %arg11: memref<125x128xbf16, #tpu.memory_space<vmem>>, %arg12: memref<128x64xbf16, #tpu.memory_space<vmem>>, %arg13: memref<1x64xf32, #tpu.memory_space<vmem>>, %arg14: memref<64x3xbf16, #tpu.memory_space<vmem>>, %arg15: memref<1x3xf32, #tpu.memory_space<vmem>>, %arg16: memref<64x3xf32, #tpu.memory_space<vmem>>) attributes {dimension_semantics = [#tpu.dimension_semantics<parallel>], iteration_bounds = array<i64: 2>, scalar_prefetch = 0 : i64, scratch_operands = 0 : i64, tpu.core_type = #tpu.core_type<tc>, window_params = [{transform_indices = @transform_0, window_bounds = array<i64: 64, 6>}, {transform_indices = @transform_1, window_bounds = array<i64: 64, 125>}, {transform_indices = @transform_2, window_bounds = array<i64: 64, 125>}, {transform_indices = @transform_3, window_bounds = array<i64: 64, 125>}, {pipeline_mode = #tpu.pipeline_mode<synchronous>, transform_indices = @transform_4, window_bounds = array<i64: 6, 32>}, {pipeline_mode = #tpu.pipeline_mode<synchronous>, transform_indices = @transform_5, window_bounds = array<i64: 1, 32>}, {pipeline_mode = #tpu.pipeline_mode<synchronous>, transform_indices = @transform_6, window_bounds = array<i64: 32, 128>}, {pipeline_mode = #tpu.pipeline_mode<synchronous>, transform_indices = @transform_7, window_bounds = array<i64: 1, 128>}, {pipeline_mode = #tpu.pipeline_mode<synchronous>, transform_indices = @transform_8, window_bounds = array<i64: 125, 128>}, {pipeline_mode = #tpu.pipeline_mode<synchronous>, transform_indices = @transform_9, window_bounds = array<i64: 125, 128>}, {pipeline_mode = #tpu.pipeline_mode<synchronous>, transform_indices = @transform_10, window_bounds = array<i64: 125, 128>}, {pipeline_mode = #tpu.pipeline_mode<synchronous>, transform_indices = @transform_11, window_bounds = array<i64: 128, 64>}, {pipeline_mode = #tpu.pipeline_mode<synchronous>, transform_indices = @transform_12, window_bounds = array<i64: 1, 64>}, {pipeline_mode = #tpu.pipeline_mode<synchronous>, transform_indices = @transform_13, window_bounds = array<i64: 64, 3>}, {pipeline_mode = #tpu.pipeline_mode<synchronous>, transform_indices = @transform_14, window_bounds = array<i64: 1, 3>}, {transform_indices = @transform_15, window_bounds = array<i64: 64, 3>}]} {
    %c0 = arith.constant 0 : index
    %c0_0 = arith.constant 0 : index
    %0 = vector.load %arg1[%c0, %c0_0] : memref<64x6xf32, #tpu.memory_space<vmem>>, vector<64x6xf32>
    %1 = arith.truncf %0 : vector<64x6xf32> to vector<64x6xbf16>
    %c0_1 = arith.constant 0 : index
    %c0_2 = arith.constant 0 : index
    %2 = vector.load %arg5[%c0_1, %c0_2] : memref<6x32xbf16, #tpu.memory_space<vmem>>, vector<6x32xbf16>
    %cst = arith.constant dense<0.000000e+00> : vector<64x32xf32>
    %3 = tpu.matmul %1, %2, %cst {dimension_numbers = #tpu.dot_dimension_numbers<[1], [0], [0], [1], [0, 0, 1, 1], [], []>} : vector<64x6xbf16>, vector<6x32xbf16>, vector<64x32xf32> -> vector<64x32xf32>
    %c0_3 = arith.constant 0 : index
    %c0_4 = arith.constant 0 : index
    %4 = vector.load %arg6[%c0_3, %c0_4] : memref<1x32xf32, #tpu.memory_space<vmem>>, vector<1x32xf32>
    %5 = vector.broadcast %4 : vector<1x32xf32> to vector<64x32xf32>
    %6 = arith.addf %3, %5 : vector<64x32xf32>
    %cst_5 = arith.constant 0.000000e+00 : f32
    %7 = vector.broadcast %cst_5 : f32 to vector<64x32xf32>
    %8 = arith.cmpf oge, %6, %7 : vector<64x32xf32>
    %cst_6 = arith.constant 1.500000e-01 : f32
    %9 = vector.broadcast %cst_6 : f32 to vector<64x32xf32>
    %10 = arith.mulf %9, %6 : vector<64x32xf32>
    %11 = arith.select %8, %6, %10 : vector<64x32xi1>, vector<64x32xf32>
    %12 = arith.truncf %11 : vector<64x32xf32> to vector<64x32xbf16>
    %c0_7 = arith.constant 0 : index
    %c0_8 = arith.constant 0 : index
    %13 = vector.load %arg7[%c0_7, %c0_8] : memref<32x128xbf16, #tpu.memory_space<vmem>>, vector<32x128xbf16>
    %cst_9 = arith.constant dense<0.000000e+00> : vector<64x128xf32>
    %14 = tpu.matmul %12, %13, %cst_9 {dimension_numbers = #tpu.dot_dimension_numbers<[1], [0], [0], [1], [0, 0, 1, 1], [], []>} : vector<64x32xbf16>, vector<32x128xbf16>, vector<64x128xf32> -> vector<64x128xf32>
    %c0_10 = arith.constant 0 : index
    %c0_11 = arith.constant 0 : index
    %15 = vector.load %arg2[%c0_10, %c0_11] : memref<64x125xi8, #tpu.memory_space<vmem>>, vector<64x125xi8>
    %16 = arith.sitofp %15 : vector<64x125xi8> to vector<64x125xf32>
    %17 = arith.truncf %16 : vector<64x125xf32> to vector<64x125xbf16>
    %c0_12 = arith.constant 0 : index
    %c0_13 = arith.constant 0 : index
    %18 = vector.load %arg9[%c0_12, %c0_13] : memref<125x128xbf16, #tpu.memory_space<vmem>>, vector<125x128xbf16>
    %cst_14 = arith.constant dense<0.000000e+00> : vector<64x128xf32>
    %19 = tpu.matmul %17, %18, %cst_14 {dimension_numbers = #tpu.dot_dimension_numbers<[1], [0], [0], [1], [0, 0, 1, 1], [], []>} : vector<64x125xbf16>, vector<125x128xbf16>, vector<64x128xf32> -> vector<64x128xf32>
    %20 = arith.addf %14, %19 : vector<64x128xf32>
    %c0_15 = arith.constant 0 : index
    %c0_16 = arith.constant 0 : index
    %21 = vector.load %arg3[%c0_15, %c0_16] : memref<64x125xi8, #tpu.memory_space<vmem>>, vector<64x125xi8>
    %22 = arith.sitofp %21 : vector<64x125xi8> to vector<64x125xf32>
    %23 = arith.truncf %22 : vector<64x125xf32> to vector<64x125xbf16>
    %c0_17 = arith.constant 0 : index
    %c0_18 = arith.constant 0 : index
    %24 = vector.load %arg10[%c0_17, %c0_18] : memref<125x128xbf16, #tpu.memory_space<vmem>>, vector<125x128xbf16>
    %cst_19 = arith.constant dense<0.000000e+00> : vector<64x128xf32>
    %25 = tpu.matmul %23, %24, %cst_19 {dimension_numbers = #tpu.dot_dimension_numbers<[1], [0], [0], [1], [0, 0, 1, 1], [], []>} : vector<64x125xbf16>, vector<125x128xbf16>, vector<64x128xf32> -> vector<64x128xf32>
    %26 = arith.addf %20, %25 : vector<64x128xf32>
    %c0_20 = arith.constant 0 : index
    %c0_21 = arith.constant 0 : index
    %27 = vector.load %arg4[%c0_20, %c0_21] : memref<64x125xi8, #tpu.memory_space<vmem>>, vector<64x125xi8>
    %28 = arith.sitofp %27 : vector<64x125xi8> to vector<64x125xf32>
    %29 = arith.truncf %28 : vector<64x125xf32> to vector<64x125xbf16>
    %c0_22 = arith.constant 0 : index
    %c0_23 = arith.constant 0 : index
    %30 = vector.load %arg11[%c0_22, %c0_23] : memref<125x128xbf16, #tpu.memory_space<vmem>>, vector<125x128xbf16>
    %cst_24 = arith.constant dense<0.000000e+00> : vector<64x128xf32>
    %31 = tpu.matmul %29, %30, %cst_24 {dimension_numbers = #tpu.dot_dimension_numbers<[1], [0], [0], [1], [0, 0, 1, 1], [], []>} : vector<64x125xbf16>, vector<125x128xbf16>, vector<64x128xf32> -> vector<64x128xf32>
    %32 = arith.addf %26, %31 : vector<64x128xf32>
    %c0_25 = arith.constant 0 : index
    %c0_26 = arith.constant 0 : index
    %33 = vector.load %arg8[%c0_25, %c0_26] : memref<1x128xf32, #tpu.memory_space<vmem>>, vector<1x128xf32>
    %34 = vector.broadcast %33 : vector<1x128xf32> to vector<64x128xf32>
    %35 = arith.addf %32, %34 : vector<64x128xf32>
    %cst_27 = arith.constant 0.000000e+00 : f32
    %36 = vector.broadcast %cst_27 : f32 to vector<64x128xf32>
    %37 = arith.cmpf oge, %35, %36 : vector<64x128xf32>
    %cst_28 = arith.constant 1.500000e-01 : f32
    %38 = vector.broadcast %cst_28 : f32 to vector<64x128xf32>
    %39 = arith.mulf %38, %35 : vector<64x128xf32>
    %40 = arith.select %37, %35, %39 : vector<64x128xi1>, vector<64x128xf32>
    %41 = arith.truncf %40 : vector<64x128xf32> to vector<64x128xbf16>
    %c0_29 = arith.constant 0 : index
    %c0_30 = arith.constant 0 : index
    %42 = vector.load %arg12[%c0_29, %c0_30] : memref<128x64xbf16, #tpu.memory_space<vmem>>, vector<128x64xbf16>
    %cst_31 = arith.constant dense<0.000000e+00> : vector<64x64xf32>
    %43 = tpu.matmul %41, %42, %cst_31 {dimension_numbers = #tpu.dot_dimension_numbers<[1], [0], [0], [1], [0, 0, 1, 1], [], []>} : vector<64x128xbf16>, vector<128x64xbf16>, vector<64x64xf32> -> vector<64x64xf32>
    %c0_32 = arith.constant 0 : index
    %c0_33 = arith.constant 0 : index
    %44 = vector.load %arg13[%c0_32, %c0_33] : memref<1x64xf32, #tpu.memory_space<vmem>>, vector<1x64xf32>
    %45 = vector.broadcast %44 : vector<1x64xf32> to vector<64x64xf32>
    %46 = arith.addf %43, %45 : vector<64x64xf32>
    %cst_34 = arith.constant 0.000000e+00 : f32
    %47 = vector.broadcast %cst_34 : f32 to vector<64x64xf32>
    %48 = arith.cmpf oge, %46, %47 : vector<64x64xf32>
    %cst_35 = arith.constant 1.500000e-01 : f32
    %49 = vector.broadcast %cst_35 : f32 to vector<64x64xf32>
    %50 = arith.mulf %49, %46 : vector<64x64xf32>
    %51 = arith.select %48, %46, %50 : vector<64x64xi1>, vector<64x64xf32>
    %52 = arith.truncf %51 : vector<64x64xf32> to vector<64x64xbf16>
    %c0_36 = arith.constant 0 : index
    %c0_37 = arith.constant 0 : index
    %53 = vector.load %arg14[%c0_36, %c0_37] : memref<64x3xbf16, #tpu.memory_space<vmem>>, vector<64x3xbf16>
    %cst_38 = arith.constant dense<0.000000e+00> : vector<64x3xf32>
    %54 = tpu.matmul %52, %53, %cst_38 {dimension_numbers = #tpu.dot_dimension_numbers<[1], [0], [0], [1], [0, 0, 1, 1], [], []>} : vector<64x64xbf16>, vector<64x3xbf16>, vector<64x3xf32> -> vector<64x3xf32>
    %c0_39 = arith.constant 0 : index
    %c0_40 = arith.constant 0 : index
    %55 = vector.load %arg15[%c0_39, %c0_40] : memref<1x3xf32, #tpu.memory_space<vmem>>, vector<1x3xf32>
    %56 = vector.broadcast %55 : vector<1x3xf32> to vector<64x3xf32>
    %57 = arith.addf %54, %56 : vector<64x3xf32>
    %58 = math.tanh %57 : vector<64x3xf32>
    %cst_41 = arith.constant 1.000000e-01 : f32
    %59 = vector.broadcast %cst_41 : f32 to vector<64x3xf32>
    %60 = arith.mulf %58, %59 : vector<64x3xf32>
    %61 = vector.extract_strided_slice %0 {offsets = [0, 0], sizes = [64, 3], strides = [1, 1]} : vector<64x6xf32> to vector<64x3xf32>
    %62 = arith.addf %61, %60 : vector<64x3xf32>
    %c0_42 = arith.constant 0 : index
    %c0_43 = arith.constant 0 : index
    %63 = vector.load %arg16[%c0_42, %c0_43] : memref<64x3xf32, #tpu.memory_space<vmem>>, vector<64x3xf32>
    tpu.vector_store %arg16[%c0_42, %c0_43], %62 {strides = array<i32>} : memref<64x3xf32, #tpu.memory_space<vmem>>, vector<64x3xf32>,
    return
  }
  func.func @transform_0(%arg0: i32) -> (i32, i32) {
    %c0_i32 = arith.constant 0 : i32
    %c0_i32_0 = arith.constant 0 : i32
    return %arg0, %c0_i32 : i32, i32
  }
  func.func @transform_1(%arg0: i32) -> (i32, i32) {
    %c0_i32 = arith.constant 0 : i32
    %c0_i32_0 = arith.constant 0 : i32
    return %arg0, %c0_i32 : i32, i32
  }
  func.func @transform_2(%arg0: i32) -> (i32, i32) {
    %c0_i32 = arith.constant 0 : i32
    %c0_i32_0 = arith.constant 0 : i32
    return %arg0, %c0_i32 : i32, i32
  }
  func.func @transform_3(%arg0: i32) -> (i32, i32) {
    %c0_i32 = arith.constant 0 : i32
    %c0_i32_0 = arith.constant 0 : i32
    return %arg0, %c0_i32 : i32, i32
  }
  func.func @transform_4(%arg0: i32) -> (i32, i32) {
    %c0_i32 = arith.constant 0 : i32
    %c0_i32_0 = arith.constant 0 : i32
    %c0_i32_1 = arith.constant 0 : i32
    return %c0_i32, %c0_i32_0 : i32, i32
  }
  func.func @transform_5(%arg0: i32) -> (i32, i32) {
    %c0_i32 = arith.constant 0 : i32
    %c0_i32_0 = arith.constant 0 : i32
    %c0_i32_1 = arith.constant 0 : i32
    return %c0_i32, %c0_i32_0 : i32, i32
  }
  func.func @transform_6(%arg0: i32) -> (i32, i32) {
    %c0_i32 = arith.constant 0 : i32
    %c0_i32_0 = arith.constant 0 : i32
    %c0_i32_1 = arith.constant 0 : i32
    return %c0_i32, %c0_i32_0 : i32, i32
  }
  func.func @transform_7(%arg0: i32) -> (i32, i32) {
    %c0_i32 = arith.constant 0 : i32
    %c0_i32_0 = arith.constant 0 : i32
    %c0_i32_1 = arith.constant 0 : i32
    return %c0_i32, %c0_i32_0 : i32, i32
  }
  func.func @transform_8(%arg0: i32) -> (i32, i32) {
    %c0_i32 = arith.constant 0 : i32
    %c0_i32_0 = arith.constant 0 : i32
    %c0_i32_1 = arith.constant 0 : i32
    return %c0_i32, %c0_i32_0 : i32, i32
  }
  func.func @transform_9(%arg0: i32) -> (i32, i32) {
    %c0_i32 = arith.constant 0 : i32
    %c0_i32_0 = arith.constant 0 : i32
    %c0_i32_1 = arith.constant 0 : i32
    return %c0_i32, %c0_i32_0 : i32, i32
  }
  func.func @transform_10(%arg0: i32) -> (i32, i32) {
    %c0_i32 = arith.constant 0 : i32
    %c0_i32_0 = arith.constant 0 : i32
    %c0_i32_1 = arith.constant 0 : i32
    return %c0_i32, %c0_i32_0 : i32, i32
  }
  func.func @transform_11(%arg0: i32) -> (i32, i32) {
    %c0_i32 = arith.constant 0 : i32
    %c0_i32_0 = arith.constant 0 : i32
    %c0_i32_1 = arith.constant 0 : i32
    return %c0_i32, %c0_i32_0 : i32, i32
  }
  func.func @transform_12(%arg0: i32) -> (i32, i32) {
    %c0_i32 = arith.constant 0 : i32
    %c0_i32_0 = arith.constant 0 : i32
    %c0_i32_1 = arith.constant 0 : i32
    return %c0_i32, %c0_i32_0 : i32, i32
  }
  func.func @transform_13(%arg0: i32) -> (i32, i32) {
    %c0_i32 = arith.constant 0 : i32
    %c0_i32_0 = arith.constant 0 : i32
    %c0_i32_1 = arith.constant 0 : i32
    return %c0_i32, %c0_i32_0 : i32, i32
  }
  func.func @transform_14(%arg0: i32) -> (i32, i32) {
    %c0_i32 = arith.constant 0 : i32
    %c0_i32_0 = arith.constant 0 : i32
    %c0_i32_1 = arith.constant 0 : i32
    return %c0_i32, %c0_i32_0 : i32, i32
  }
  func.func @transform_15(%arg0: i32) -> (i32, i32) {
    %c0_i32 = arith.constant 0 : i32
    %c0_i32_0 = arith.constant 0 : i32
    return %arg0, %c0_i32 : i32, i32
  }
}

</mosaic_0001>

<llo_original>
// kernel: tpu_custom_call.1
$region0: #{tpu_custom_call.1}
  #allocation0 [shape = 'u32[]', space=smem, size = 0x4, offset = 0x4, fixed_abs, tag = 'smem constant byte address 0x4 - core index']
  #allocation1 [shape = 'u32[72,128]{1,0:T(1,128)}', space=vmem, size = 0x9000, scoped, tag = 'internal scratch']
  %s0 = inlined_call_operand.vmem [shape: f32[128,6], index: 0, kind: input, shape index: {}]
  %s1 = inlined_call_operand.vmem [shape: s8[128,125], index: 1, kind: input, shape index: {}]
  %s2 = inlined_call_operand.hbm [shape: s8[128,125], index: 2, kind: input, shape index: {}]
  %s3 = inlined_call_operand.hbm [shape: s8[128,125], index: 3, kind: input, shape index: {}]
  %s4 = inlined_call_operand.vmem [shape: bf16[6,32], index: 4, kind: input, shape index: {}]
  %s5 = inlined_call_operand.vmem [shape: f32[1,32], index: 5, kind: input, shape index: {}]
  %s6 = inlined_call_operand.hbm [shape: bf16[32,128], index: 6, kind: input, shape index: {}]
  %s7 = inlined_call_operand.vmem [shape: f32[1,128], index: 7, kind: input, shape index: {}]
  %s8 = inlined_call_operand.vmem [shape: bf16[125,128], index: 8, kind: input, shape index: {}]
  %s9 = inlined_call_operand.vmem [shape: bf16[125,128], index: 9, kind: input, shape index: {}]
  %s10 = inlined_call_operand.vmem [shape: bf16[125,128], index: 10, kind: input, shape index: {}]
  %s11 = inlined_call_operand.vmem [shape: bf16[128,64], index: 11, kind: input, shape index: {}]
  %s12 = inlined_call_operand.vmem [shape: f32[1,64], index: 12, kind: input, shape index: {}]
  %s13 = inlined_call_operand.vmem [shape: bf16[64,3], index: 13, kind: input, shape index: {}]
  %s14 = inlined_call_operand.vmem [shape: f32[1,3], index: 14, kind: input, shape index: {}]
  %s15 = inlined_call_operand.vmem [shape: f32[128,3], index: 15, kind: output, shape index: {}]
  %s16 = sld [smem:[#allocation0]]
  $region105: #{tpu_custom_call.1} parent=0
    _
  %s18 = ssub.s32 1, %s16
  %s19 = scalar_select 0, %s18, %s16
  $region1: #{tpu_custom_call.1} parent=0
    #allocation2 [shape = 'u8[16384]{0}', space=vmem, size = 0x4000, scoped, tag = 'input window, operand 2']
    #allocation3 [shape = 's32[2]{0}', space=sflag, size = 0x8, scoped, tag = 'scoped memory for tpu_custom_call.1']
    #allocation4 [shape = 'u8[16384]{0}', space=vmem, size = 0x4000, scoped, tag = 'input window, operand 3']
    #allocation5 [shape = 's32[2]{0}', space=sflag, size = 0x8, scoped, tag = 'scoped memory for tpu_custom_call.1']
    #allocation6 [shape = 'u8[8192]{0}', space=vmem, size = 0x2000, scoped, tag = 'input window, operand 6, single buffered']
    %20 = vsyncpa [#allocation3], 0
    %s21 = scalar_lea.sflag [#allocation3], 1
    %22 = vsyncpa %s21, 0
    %23 = vsyncpa [#allocation5], 0
    %s24 = scalar_lea.sflag [#allocation5], 1
    %25 = vsyncpa %s24, 0
    loop: start=0, step=1, limit=4
    $region2: #{tpu_custom_call.1} parent=1 // loop_pre_header
      _
    $region3: #{tpu_custom_call.1} parent=1 // loop_header
      %s27 = sphi 0, %s31
      %p28 = scmp.ge.s32.totalorder %s27, 4
      %s37 = sphi 0, %s39
      %s40 = sphi 0, %s37
      %s41 = sphi 0, %s40
      %s57 = sphi 0, %s41
      %s63 = sphi 0, %s65
      %s66 = sphi 0, %s63
      %s67 = sphi 0, %s66
      %s83 = sphi 0, %s67
      %s89 = sphi 0, %s91
      %s92 = sphi 0, %s89
      %s93 = sphi 0, %s92
      %s109 = sphi 0, %s93
      %s115 = sphi 0, %s117
      %s118 = sphi 0, %s115
      %s119 = sphi 0, %s118
      %s135 = sphi 0, %s119
      %s139 = sphi 0, %s139
      %s141 = sphi 0, %s139
      %s142 = sphi 0, %s141
      %s156 = sphi 0, %s142
      %s160 = sphi 0, %s160
      %s162 = sphi 0, %s160
      %s163 = sphi 0, %s162
      %s177 = sphi 0, %s163
      %s181 = sphi 0, %s181
      %s183 = sphi 0, %s181
      %s184 = sphi 0, %s183
      %s198 = sphi 0, %s184
      %s202 = sphi 0, %s202
      %s204 = sphi 0, %s202
      %s205 = sphi 0, %s204
      %s219 = sphi 0, %s205
      %s223 = sphi 0, %s223
      %s225 = sphi 0, %s223
      %s226 = sphi 0, %s225
      %s240 = sphi 0, %s226
      %s244 = sphi 0, %s244
      %s246 = sphi 0, %s244
      %s247 = sphi 0, %s246
      %s261 = sphi 0, %s247
      %s265 = sphi 0, %s265
      %s267 = sphi 0, %s265
      %s268 = sphi 0, %s267
      %s282 = sphi 0, %s268
      %s286 = sphi 0, %s286
      %s288 = sphi 0, %s286
      %s289 = sphi 0, %s288
      %s303 = sphi 0, %s289
      %s307 = sphi 0, %s307
      %s309 = sphi 0, %s307
      %s310 = sphi 0, %s309
      %s324 = sphi 0, %s310
      %s328 = sphi 0, %s328
      %s330 = sphi 0, %s328
      %s331 = sphi 0, %s330
      %s345 = sphi 0, %s331
      %s349 = sphi 0, %s349
      %s351 = sphi 0, %s349
      %s352 = sphi 0, %s351
      %s366 = sphi 0, %s352
      %s372 = sphi 0, %s374
      %s375 = sphi 0, %s372
      %s376 = sphi 0, %s375
      %s392 = sphi 0, %s376
    $region4: #{tpu_custom_call.1} parent=1 // loop_header_branch
      %30 = sbr.rel (%p28) target = $region8
    $region5: #{tpu_custom_call.1} parent=1 // loop_body
      %s32 = ssub.s32 %s27, 1
      %s33 = ssub.s32 %s27, 2
      %s34 = sadd.s32 %s27, 1
      %s35 = ssub.s32 %s27, %s34
      %p36 = scmp.eq.s32.totalorder %s35, 0
      %s38 = sadd.s32 %s37, 1
      %s39 = scalar_select %p36, %s37, %s38
      %p42 = pneg %p36
      %p43 = scmp.eq.s32.totalorder %s27, 1
      %p44 = por %p42, %p43
      %p45 = scmp.ne.s32.totalorder %s37, %s40
      %p46 = scmp.eq.s32.totalorder %s27, 0
      %p47 = por %p45, %p46
      %p48 = scmp.ne.s32.totalorder %s37, %s40
      %p49 = scmp.eq.s32.totalorder %s32, 1
      %p50 = por %p48, %p49
      %p51 = scmp.ne.s32.totalorder %s40, %s41
      %p52 = scmp.eq.s32.totalorder %s32, 0
      %p53 = por %p51, %p52
      %p54 = scmp.ne.s32.totalorder %s40, %s41
      %p55 = scmp.eq.s32.totalorder %s33, 1
      %p56 = por %p54, %p55
      %p58 = scmp.ne.s32.totalorder %s41, %s57
      %p59 = scmp.eq.s32.totalorder %s33, 0
      %p60 = por %p58, %p59
      %s61 = ssub.s32 %s27, %s34
      %p62 = scmp.eq.s32.totalorder %s61, 0
      %s64 = sadd.s32 %s63, 1
      %s65 = scalar_select %p62, %s63, %s64
      %p68 = pneg %p62
      %p69 = scmp.eq.s32.totalorder %s27, 1
      %p70 = por %p68, %p69
      %p71 = scmp.ne.s32.totalorder %s63, %s66
      %p72 = scmp.eq.s32.totalorder %s27, 0
      %p73 = por %p71, %p72
      %p74 = scmp.ne.s32.totalorder %s63, %s66
      %p75 = scmp.eq.s32.totalorder %s32, 1
      %p76 = por %p74, %p75
      %p77 = scmp.ne.s32.totalorder %s66, %s67
      %p78 = scmp.eq.s32.totalorder %s32, 0
      %p79 = por %p77, %p78
      %p80 = scmp.ne.s32.totalorder %s66, %s67
      %p81 = scmp.eq.s32.totalorder %s33, 1
      %p82 = por %p80, %p81
      %p84 = scmp.ne.s32.totalorder %s67, %s83
      %p85 = scmp.eq.s32.totalorder %s33, 0
      %p86 = por %p84, %p85
      %s87 = ssub.s32 %s27, %s34
      %p88 = scmp.eq.s32.totalorder %s87, 0
      %s90 = sadd.s32 %s89, 1
      %s91 = scalar_select %p88, %s89, %s90
      %p94 = pneg %p88
      %p95 = scmp.eq.s32.totalorder %s27, 1
      %p96 = por %p94, %p95
      %p97 = scmp.ne.s32.totalorder %s89, %s92
      %p98 = scmp.eq.s32.totalorder %s27, 0
      %p99 = por %p97, %p98
      %p100 = scmp.ne.s32.totalorder %s89, %s92
      %p101 = scmp.eq.s32.totalorder %s32, 1
      %p102 = por %p100, %p101
      %p103 = scmp.ne.s32.totalorder %s92, %s93
      %p104 = scmp.eq.s32.totalorder %s32, 0
      %p105 = por %p103, %p104
      %p106 = scmp.ne.s32.totalorder %s92, %s93
      %p107 = scmp.eq.s32.totalorder %s33, 1
      %p108 = por %p106, %p107
      %p110 = scmp.ne.s32.totalorder %s93, %s109
      %p111 = scmp.eq.s32.totalorder %s33, 0
      %p112 = por %p110, %p111
      %s113 = ssub.s32 %s27, %s34
      %p114 = scmp.eq.s32.totalorder %s113, 0
      %s116 = sadd.s32 %s115, 1
      %s117 = scalar_select %p114, %s115, %s116
      %p120 = pneg %p114
      %p121 = scmp.eq.s32.totalorder %s27, 1
      %p122 = por %p120, %p121
      %p123 = scmp.ne.s32.totalorder %s115, %s118
      %p124 = scmp.eq.s32.totalorder %s27, 0
      %p125 = por %p123, %p124
      %p126 = scmp.ne.s32.totalorder %s115, %s118
      %p127 = scmp.eq.s32.totalorder %s32, 1
      %p128 = por %p126, %p127
      %p129 = scmp.ne.s32.totalorder %s118, %s119
      %p130 = scmp.eq.s32.totalorder %s32, 0
      %p131 = por %p129, %p130
      %p132 = scmp.ne.s32.totalorder %s118, %s119
      %p133 = scmp.eq.s32.totalorder %s33, 1
      %p134 = por %p132, %p133
      %p136 = scmp.ne.s32.totalorder %s119, %s135
      %p137 = scmp.eq.s32.totalorder %s33, 0
      %p138 = por %p136, %p137
      %s140 = sadd.s32 %s139, 1
      %p143 = scmp.eq.s32.totalorder %s27, 1
      %p144 = scmp.ne.s32.totalorder %s139, %s141
      %p145 = scmp.eq.s32.totalorder %s27, 0
      %p146 = por %p144, %p145
      %p147 = scmp.ne.s32.totalorder %s139, %s141
      %p148 = scmp.eq.s32.totalorder %s32, 1
      %p149 = por %p147, %p148
      %p150 = scmp.ne.s32.totalorder %s141, %s142
      %p151 = scmp.eq.s32.totalorder %s32, 0
      %p152 = por %p150, %p151
      %p153 = scmp.ne.s32.totalorder %s141, %s142
      %p154 = scmp.eq.s32.totalorder %s33, 1
      %p155 = por %p153, %p154
      %p157 = scmp.ne.s32.totalorder %s142, %s156
      %p158 = scmp.eq.s32.totalorder %s33, 0
      %p159 = por %p157, %p158
      %s161 = sadd.s32 %s160, 1
      %p164 = scmp.eq.s32.totalorder %s27, 1
      %p165 = scmp.ne.s32.totalorder %s160, %s162
      %p166 = scmp.eq.s32.totalorder %s27, 0
      %p167 = por %p165, %p166
      %p168 = scmp.ne.s32.totalorder %s160, %s162
      %p169 = scmp.eq.s32.totalorder %s32, 1
      %p170 = por %p168, %p169
      %p171 = scmp.ne.s32.totalorder %s162, %s163
      %p172 = scmp.eq.s32.totalorder %s32, 0
      %p173 = por %p171, %p172
      %p174 = scmp.ne.s32.totalorder %s162, %s163
      %p175 = scmp.eq.s32.totalorder %s33, 1
      %p176 = por %p174, %p175
      %p178 = scmp.ne.s32.totalorder %s163, %s177
      %p179 = scmp.eq.s32.totalorder %s33, 0
      %p180 = por %p178, %p179
      %s182 = sadd.s32 %s181, 1
      %p185 = scmp.eq.s32.totalorder %s27, 1
      %p186 = scmp.ne.s32.totalorder %s181, %s183
      %p187 = scmp.eq.s32.totalorder %s27, 0
      %p188 = por %p186, %p187
      %p189 = scmp.ne.s32.totalorder %s181, %s183
      %p190 = scmp.eq.s32.totalorder %s32, 1
      %p191 = por %p189, %p190
      %p192 = scmp.ne.s32.totalorder %s183, %s184
      %p193 = scmp.eq.s32.totalorder %s32, 0
      %p194 = por %p192, %p193
      %p195 = scmp.ne.s32.totalorder %s183, %s184
      %p196 = scmp.eq.s32.totalorder %s33, 1
      %p197 = por %p195, %p196
      %p199 = scmp.ne.s32.totalorder %s184, %s198
      %p200 = scmp.eq.s32.totalorder %s33, 0
      %p201 = por %p199, %p200
      %s203 = sadd.s32 %s202, 1
      %p206 = scmp.eq.s32.totalorder %s27, 1
      %p207 = scmp.ne.s32.totalorder %s202, %s204
      %p208 = scmp.eq.s32.totalorder %s27, 0
      %p209 = por %p207, %p208
      %p210 = scmp.ne.s32.totalorder %s202, %s204
      %p211 = scmp.eq.s32.totalorder %s32, 1
      %p212 = por %p210, %p211
      %p213 = scmp.ne.s32.totalorder %s204, %s205
      %p214 = scmp.eq.s32.totalorder %s32, 0
      %p215 = por %p213, %p214
      %p216 = scmp.ne.s32.totalorder %s204, %s205
      %p217 = scmp.eq.s32.totalorder %s33, 1
      %p218 = por %p216, %p217
      %p220 = scmp.ne.s32.totalorder %s205, %s219
      %p221 = scmp.eq.s32.totalorder %s33, 0
      %p222 = por %p220, %p221
      %s224 = sadd.s32 %s223, 1
      %p227 = scmp.eq.s32.totalorder %s27, 1
      %p228 = scmp.ne.s32.totalorder %s223, %s225
      %p229 = scmp.eq.s32.totalorder %s27, 0
      %p230 = por %p228, %p229
      %p231 = scmp.ne.s32.totalorder %s223, %s225
      %p232 = scmp.eq.s32.totalorder %s32, 1
      %p233 = por %p231, %p232
      %p234 = scmp.ne.s32.totalorder %s225, %s226
      %p235 = scmp.eq.s32.totalorder %s32, 0
      %p236 = por %p234, %p235
      %p237 = scmp.ne.s32.totalorder %s225, %s226
      %p238 = scmp.eq.s32.totalorder %s33, 1
      %p239 = por %p237, %p238
      %p241 = scmp.ne.s32.totalorder %s226, %s240
      %p242 = scmp.eq.s32.totalorder %s33, 0
      %p243 = por %p241, %p242
      %s245 = sadd.s32 %s244, 1
      %p248 = scmp.eq.s32.totalorder %s27, 1
      %p249 = scmp.ne.s32.totalorder %s244, %s246
      %p250 = scmp.eq.s32.totalorder %s27, 0
      %p251 = por %p249, %p250
      %p252 = scmp.ne.s32.totalorder %s244, %s246
      %p253 = scmp.eq.s32.totalorder %s32, 1
      %p254 = por %p252, %p253
      %p255 = scmp.ne.s32.totalorder %s246, %s247
      %p256 = scmp.eq.s32.totalorder %s32, 0
      %p257 = por %p255, %p256
      %p258 = scmp.ne.s32.totalorder %s246, %s247
      %p259 = scmp.eq.s32.totalorder %s33, 1
      %p260 = por %p258, %p259
      %p262 = scmp.ne.s32.totalorder %s247, %s261
      %p263 = scmp.eq.s32.totalorder %s33, 0
      %p264 = por %p262, %p263
      %s266 = sadd.s32 %s265, 1
      %p269 = scmp.eq.s32.totalorder %s27, 1
      %p270 = scmp.ne.s32.totalorder %s265, %s267
      %p271 = scmp.eq.s32.totalorder %s27, 0
      %p272 = por %p270, %p271
      %p273 = scmp.ne.s32.totalorder %s265, %s267
      %p274 = scmp.eq.s32.totalorder %s32, 1
      %p275 = por %p273, %p274
      %p276 = scmp.ne.s32.totalorder %s267, %s268
      %p277 = scmp.eq.s32.totalorder %s32, 0
      %p278 = por %p276, %p277
      %p279 = scmp.ne.s32.totalorder %s267, %s268
      %p280 = scmp.eq.s32.totalorder %s33, 1
      %p281 = por %p279, %p280
      %p283 = scmp.ne.s32.totalorder %s268, %s282
      %p284 = scmp.eq.s32.totalorder %s33, 0
      %p285 = por %p283, %p284
      %s287 = sadd.s32 %s286, 1
      %p290 = scmp.eq.s32.totalorder %s27, 1
      %p291 = scmp.ne.s32.totalorder %s286, %s288
      %p292 = scmp.eq.s32.totalorder %s27, 0
      %p293 = por %p291, %p292
      %p294 = scmp.ne.s32.totalorder %s286, %s288
      %p295 = scmp.eq.s32.totalorder %s32, 1
      %p296 = por %p294, %p295
      %p297 = scmp.ne.s32.totalorder %s288, %s289
      %p298 = scmp.eq.s32.totalorder %s32, 0
      %p299 = por %p297, %p298
      %p300 = scmp.ne.s32.totalorder %s288, %s289
      %p301 = scmp.eq.s32.totalorder %s33, 1
      %p302 = por %p300, %p301
      %p304 = scmp.ne.s32.totalorder %s289, %s303
      %p305 = scmp.eq.s32.totalorder %s33, 0
      %p306 = por %p304, %p305
      %s308 = sadd.s32 %s307, 1
      %p311 = scmp.eq.s32.totalorder %s27, 1
      %p312 = scmp.ne.s32.totalorder %s307, %s309
      %p313 = scmp.eq.s32.totalorder %s27, 0
      %p314 = por %p312, %p313
      %p315 = scmp.ne.s32.totalorder %s307, %s309
      %p316 = scmp.eq.s32.totalorder %s32, 1
      %p317 = por %p315, %p316
      %p318 = scmp.ne.s32.totalorder %s309, %s310
      %p319 = scmp.eq.s32.totalorder %s32, 0
      %p320 = por %p318, %p319
      %p321 = scmp.ne.s32.totalorder %s309, %s310
      %p322 = scmp.eq.s32.totalorder %s33, 1
      %p323 = por %p321, %p322
      %p325 = scmp.ne.s32.totalorder %s310, %s324
      %p326 = scmp.eq.s32.totalorder %s33, 0
      %p327 = por %p325, %p326
      %s329 = sadd.s32 %s328, 1
      %p332 = scmp.eq.s32.totalorder %s27, 1
      %p333 = scmp.ne.s32.totalorder %s328, %s330
      %p334 = scmp.eq.s32.totalorder %s27, 0
      %p335 = por %p333, %p334
      %p336 = scmp.ne.s32.totalorder %s328, %s330
      %p337 = scmp.eq.s32.totalorder %s32, 1
      %p338 = por %p336, %p337
      %p339 = scmp.ne.s32.totalorder %s330, %s331
      %p340 = scmp.eq.s32.totalorder %s32, 0
      %p341 = por %p339, %p340
      %p342 = scmp.ne.s32.totalorder %s330, %s331
      %p343 = scmp.eq.s32.totalorder %s33, 1
      %p344 = por %p342, %p343
      %p346 = scmp.ne.s32.totalorder %s331, %s345
      %p347 = scmp.eq.s32.totalorder %s33, 0
      %p348 = por %p346, %p347
      %s350 = sadd.s32 %s349, 1
      %p353 = scmp.eq.s32.totalorder %s27, 1
      %p354 = scmp.ne.s32.totalorder %s349, %s351
      %p355 = scmp.eq.s32.totalorder %s27, 0
      %p356 = por %p354, %p355
      %p357 = scmp.ne.s32.totalorder %s349, %s351
      %p358 = scmp.eq.s32.totalorder %s32, 1
      %p359 = por %p357, %p358
      %p360 = scmp.ne.s32.totalorder %s351, %s352
      %p361 = scmp.eq.s32.totalorder %s32, 0
      %p362 = por %p360, %p361
      %p363 = scmp.ne.s32.totalorder %s351, %s352
      %p364 = scmp.eq.s32.totalorder %s33, 1
      %p365 = por %p363, %p364
      %p367 = scmp.ne.s32.totalorder %s352, %s366
      %p368 = scmp.eq.s32.totalorder %s33, 0
      %p369 = por %p367, %p368
      %s370 = ssub.s32 %s27, %s34
      %p371 = scmp.eq.s32.totalorder %s370, 0
      %s373 = sadd.s32 %s372, 1
      %s374 = scalar_select %p371, %s372, %s373
      %p377 = pneg %p371
      %p378 = scmp.eq.s32.totalorder %s27, 1
      %p379 = por %p377, %p378
      %p380 = scmp.ne.s32.totalorder %s372, %s375
      %p381 = scmp.eq.s32.totalorder %s27, 0
      %p382 = por %p380, %p381
      %p383 = scmp.ne.s32.totalorder %s372, %s375
      %p384 = scmp.eq.s32.totalorder %s32, 1
      %p385 = por %p383, %p384
      %p386 = scmp.ne.s32.totalorder %s375, %s376
      %p387 = scmp.eq.s32.totalorder %s32, 0
      %p388 = por %p386, %p387
      %p389 = scmp.ne.s32.totalorder %s375, %s376
      %p390 = scmp.eq.s32.totalorder %s33, 1
      %p391 = por %p389, %p390
      %p393 = scmp.ne.s32.totalorder %s376, %s392
      %p394 = scmp.eq.s32.totalorder %s33, 0
      %p395 = por %p393, %p394
      %p396 = scmp.le.s32.totalorder 1, %s27
      %p397 = scmp.lt.s32.totalorder %s27, 3
      %p398 = pnand %p396, %p397
      %p399 = pneg %p398
      // Predicated region
      $region9: #{tpu_custom_call.1} parent=5 // pred_check
        _
      $region10: #{tpu_custom_call.1} parent=5 // pred_check_branch
        %401 = sbr.rel (%p398) target = $region12
      $region11: #{tpu_custom_call.1} parent=5 // pred_region
        %s402 = ssub.s32 %s27, 1
        // Predicated region
        $region13: #{tpu_custom_call.1} parent=11 // pred_check
          %p403 = pneg %p152
        $region14: #{tpu_custom_call.1} parent=11 // pred_check_branch
          %405 = sbr.rel (%p403) target = $region16
        $region15: #{tpu_custom_call.1} parent=11 // pred_region
          _
        $region16: #{tpu_custom_call.1} parent=11 // pred_fallthru
          _
        // Predicated region
        $region17: #{tpu_custom_call.1} parent=11 // pred_check
          %p406 = pneg %p173
        $region18: #{tpu_custom_call.1} parent=11 // pred_check_branch
          %408 = sbr.rel (%p406) target = $region20
        $region19: #{tpu_custom_call.1} parent=11 // pred_region
          _
        $region20: #{tpu_custom_call.1} parent=11 // pred_fallthru
          _
        // Predicated region
        $region21: #{tpu_custom_call.1} parent=11 // pred_check
          %p409 = pneg %p194
        $region22: #{tpu_custom_call.1} parent=11 // pred_check_branch
          %411 = sbr.rel (%p409) target = $region24
        $region23: #{tpu_custom_call.1} parent=11 // pred_region
          %413 = vsyncadd [#allocation5], 0
          %s414 = sshll.u32 %s6, 4
          %s415 = int_to_ptr.hbm [resolvable:$true] %s414
          %s416 = sshll.u32 [#allocation6], 4
          %s417 = int_to_ptr.vmem [resolvable:$true] %s416
          %422 = dma.hbm_to_vmem [thread:$0]  %s415, 256, %s417, [#allocation5], 64, 64, 4
        $region24: #{tpu_custom_call.1} parent=11 // pred_fallthru
          _
        // Predicated region
        $region25: #{tpu_custom_call.1} parent=11 // pred_check
          %p423 = pneg %p215
        $region26: #{tpu_custom_call.1} parent=11 // pred_check_branch
          %425 = sbr.rel (%p423) target = $region28
        $region27: #{tpu_custom_call.1} parent=11 // pred_region
          _
        $region28: #{tpu_custom_call.1} parent=11 // pred_fallthru
          _
        // Predicated region
        $region29: #{tpu_custom_call.1} parent=11 // pred_check
          %p426 = pneg %p236
        $region30: #{tpu_custom_call.1} parent=11 // pred_check_branch
          %428 = sbr.rel (%p426) target = $region32
        $region31: #{tpu_custom_call.1} parent=11 // pred_region
          _
        $region32: #{tpu_custom_call.1} parent=11 // pred_fallthru
          _
        // Predicated region
        $region33: #{tpu_custom_call.1} parent=11 // pred_check
          %p429 = pneg %p257
        $region34: #{tpu_custom_call.1} parent=11 // pred_check_branch
          %431 = sbr.rel (%p429) target = $region36
        $region35: #{tpu_custom_call.1} parent=11 // pred_region
          _
        $region36: #{tpu_custom_call.1} parent=11 // pred_fallthru
          _
        // Predicated region
        $region37: #{tpu_custom_call.1} parent=11 // pred_check
          %p432 = pneg %p278
        $region38: #{tpu_custom_call.1} parent=11 // pred_check_branch
          %434 = sbr.rel (%p432) target = $region40
        $region39: #{tpu_custom_call.1} parent=11 // pred_region
          _
        $region40: #{tpu_custom_call.1} parent=11 // pred_fallthru
          _
        // Predicated region
        $region41: #{tpu_custom_call.1} parent=11 // pred_check
          %p435 = pneg %p299
        $region42: #{tpu_custom_call.1} parent=11 // pred_check_branch
          %437 = sbr.rel (%p435) target = $region44
        $region43: #{tpu_custom_call.1} parent=11 // pred_region
          _
        $region44: #{tpu_custom_call.1} parent=11 // pred_fallthru
          _
        // Predicated region
        $region45: #{tpu_custom_call.1} parent=11 // pred_check
          %p438 = pneg %p320
        $region46: #{tpu_custom_call.1} parent=11 // pred_check_branch
          %440 = sbr.rel (%p438) target = $region48
        $region47: #{tpu_custom_call.1} parent=11 // pred_region
          _
        $region48: #{tpu_custom_call.1} parent=11 // pred_fallthru
          _
        // Predicated region
        $region49: #{tpu_custom_call.1} parent=11 // pred_check
          %p441 = pneg %p341
        $region50: #{tpu_custom_call.1} parent=11 // pred_check_branch
          %443 = sbr.rel (%p441) target = $region52
        $region51: #{tpu_custom_call.1} parent=11 // pred_region
          _
        $region52: #{tpu_custom_call.1} parent=11 // pred_fallthru
          _
        // Predicated region
        $region53: #{tpu_custom_call.1} parent=11 // pred_check
          %p444 = pneg %p362
        $region54: #{tpu_custom_call.1} parent=11 // pred_check_branch
          %446 = sbr.rel (%p444) target = $region56
        $region55: #{tpu_custom_call.1} parent=11 // pred_region
          _
        $region56: #{tpu_custom_call.1} parent=11 // pred_fallthru
          _
      $region12: #{tpu_custom_call.1} parent=5 // pred_fallthru
        _
      %p447 = scmp.lt.s32.totalorder %s27, 2
      // Predicated region
      $region57: #{tpu_custom_call.1} parent=5 // pred_check
        %p448 = pneg %p447
      $region58: #{tpu_custom_call.1} parent=5 // pred_check_branch
        %450 = sbr.rel (%p448) target = $region60
      $region59: #{tpu_custom_call.1} parent=5 // pred_region
        // Predicated region
        $region61: #{tpu_custom_call.1} parent=59 // pred_check
          %p451 = pneg %p47
        $region62: #{tpu_custom_call.1} parent=59 // pred_check_branch
          %453 = sbr.rel (%p451) target = $region64
        $region63: #{tpu_custom_call.1} parent=59 // pred_region
          %s454 = smul.u32 8, %s27
          %p455 = scmp.lt.s32.totalorder %s454, 15
          %s456 = scalar_select %p455, %s454, 15
          %s457 = smul.addr %s456, 8
          %s458 = scalar_lea.vmem %s0, %s457
          %s459 = smul.u32 8, %s27
        $region64: #{tpu_custom_call.1} parent=59 // pred_fallthru
          _
        // Predicated region
        $region65: #{tpu_custom_call.1} parent=59 // pred_check
          %p460 = pneg %p73
        $region66: #{tpu_custom_call.1} parent=59 // pred_check_branch
          %462 = sbr.rel (%p460) target = $region68
        $region67: #{tpu_custom_call.1} parent=59 // pred_region
          %s463 = smul.u32 2, %s27
          %p464 = scmp.lt.s32.totalorder %s463, 3
          %s465 = scalar_select %p464, %s463, 3
          %s466 = smul.addr %s465, 8
          %s467 = scalar_lea.vmem %s1, %s466
          %s468 = smul.u32 2, %s27
        $region68: #{tpu_custom_call.1} parent=59 // pred_fallthru
          _
        // Predicated region
        $region69: #{tpu_custom_call.1} parent=59 // pred_check
          %p469 = pneg %p99
        $region70: #{tpu_custom_call.1} parent=59 // pred_check_branch
          %471 = sbr.rel (%p469) target = $region72
        $region71: #{tpu_custom_call.1} parent=59 // pred_region
          %s472 = sand.u32 %s89, 1
          %s473 = scalar_lea.sflag [#allocation3], %s472
          %s474 = sand.u32 %s89, 1
          %s475 = smul.addr %s474, 16
          %s476 = scalar_lea.vmem [#allocation2], %s475
          %s477 = smul.u32 2, %s27
          %479 = vsyncadd %s473, 0
          %s480 = smul.addr %s477, 8
          %s481 = scalar_lea.hbm %s2, %s480
          %s482 = sshll.u32 %s481, 4
          %s483 = int_to_ptr.hbm [resolvable:$true] %s482
          %s484 = sshll.u32 %s476, 4
          %s485 = int_to_ptr.vmem [resolvable:$true] %s484
          %490 = dma.hbm_to_vmem [thread:$0]  %s483, 256, %s485, %s473, 128, 128, 8
        $region72: #{tpu_custom_call.1} parent=59 // pred_fallthru
          _
        // Predicated region
        $region73: #{tpu_custom_call.1} parent=59 // pred_check
          %p491 = pneg %p125
        $region74: #{tpu_custom_call.1} parent=59 // pred_check_branch
          %493 = sbr.rel (%p491) target = $region76
        $region75: #{tpu_custom_call.1} parent=59 // pred_region
          %s494 = sand.u32 %s27, 1
          %s495 = scalar_lea.sflag [#allocation5], %s494
          %s496 = sand.u32 %s115, 1
          %s497 = smul.addr %s496, 16
          %s498 = scalar_lea.vmem [#allocation4], %s497
          %s499 = smul.u32 2, %s27
          %501 = vsyncadd %s495, 0
          %s502 = smul.addr %s499, 8
          %s503 = scalar_lea.hbm %s3, %s502
          %s504 = sshll.u32 %s503, 4
          %s505 = int_to_ptr.hbm [resolvable:$true] %s504
          %s506 = sshll.u32 %s498, 4
          %s507 = int_to_ptr.vmem [resolvable:$true] %s506
          %512 = dma.hbm_to_vmem [thread:$0]  %s505, 256, %s507, %s495, 128, 128, 8
        $region76: #{tpu_custom_call.1} parent=59 // pred_fallthru
          _
      $region60: #{tpu_custom_call.1} parent=5 // pred_fallthru
        _
      %p513 = scmp.le.s32.totalorder 1, %s27
      %p514 = scmp.lt.s32.totalorder %s27, 3
      %p515 = pnand %p513, %p514
      %p516 = pneg %p515
      // Predicated region
      $region77: #{tpu_custom_call.1} parent=5 // pred_check
        _
      $region78: #{tpu_custom_call.1} parent=5 // pred_check_branch
        %518 = sbr.rel (%p515) target = $region80
      $region79: #{tpu_custom_call.1} parent=5 // pred_region
        %s519 = ssub.s32 %s27, 1
        %s520 = sand.u32 %s92, 1
        %s521 = scalar_lea.sflag [#allocation3], %s520
        %s522 = sand.u32 %s92, 1
        %s523 = smul.addr %s522, 16
        %s524 = scalar_lea.vmem [#allocation2], %s523
        // Predicated region
        $region81: #{tpu_custom_call.1} parent=79 // pred_check
          %p525 = pneg %p105
        $region82: #{tpu_custom_call.1} parent=79 // pred_check_branch
          %527 = sbr.rel (%p525) target = $region84
        $region83: #{tpu_custom_call.1} parent=79 // pred_region
          %529 = dma.done %s521, 256
        $region84: #{tpu_custom_call.1} parent=79 // pred_fallthru
          _
        %s530 = sand.u32 %s32, 1
        %s531 = scalar_lea.sflag [#allocation5], %s530
        %s532 = sand.u32 %s118, 1
        %s533 = smul.addr %s532, 16
        %s534 = scalar_lea.vmem [#allocation4], %s533
        // Predicated region
        $region85: #{tpu_custom_call.1} parent=79 // pred_check
          %p535 = pneg %p131
        $region86: #{tpu_custom_call.1} parent=79 // pred_check_branch
          %537 = sbr.rel (%p535) target = $region88
        $region87: #{tpu_custom_call.1} parent=79 // pred_region
          %539 = dma.done %s531, 256
        $region88: #{tpu_custom_call.1} parent=79 // pred_fallthru
          _
        // Predicated region
        $region89: #{tpu_custom_call.1} parent=79 // pred_check
          %p540 = pneg %p194
        $region90: #{tpu_custom_call.1} parent=79 // pred_check_branch
          %542 = sbr.rel (%p540) target = $region92
        $region91: #{tpu_custom_call.1} parent=79 // pred_region
          %544 = dma.done [#allocation5], 256
        $region92: #{tpu_custom_call.1} parent=79 // pred_fallthru
          _
        %s545 = smul.u32 8, %s32
        %p546 = scmp.lt.s32.totalorder %s545, 15
        %s547 = scalar_select %p546, %s545, 15
        %s548 = smul.addr %s547, 8
        %s549 = scalar_lea.vmem %s0, %s548
        %p550 = pneg %p53
        %p551 = pneg %p50
        %s552 = smul.u32 2, %s32
        %p553 = scmp.lt.s32.totalorder %s552, 3
        %s554 = scalar_select %p553, %s552, 3
        %s555 = smul.addr %s554, 8
        %s556 = scalar_lea.vmem %s1, %s555
        %p557 = pneg %p79
        %p558 = pneg %p76
        %s559 = sand.u32 %s92, 1
        %s560 = scalar_lea.sflag [#allocation3], %s559
        %s561 = sand.u32 %s92, 1
        %s562 = smul.addr %s561, 16
        %s563 = scalar_lea.vmem [#allocation2], %s562
        %p564 = pneg %p105
        %p565 = pneg %p102
        %s566 = sand.u32 %s32, 1
        %s567 = scalar_lea.sflag [#allocation5], %s566
        %s568 = sand.u32 %s118, 1
        %s569 = smul.addr %s568, 16
        %s570 = scalar_lea.vmem [#allocation4], %s569
        %p571 = pneg %p131
        %p572 = pneg %p128
        %p573 = pneg %p152
        %p574 = pneg %p149
        %p575 = pneg %p173
        %p576 = pneg %p170
        %p577 = pneg %p194
        %p578 = pneg %p191
        %p579 = pneg %p215
        %p580 = pneg %p212
        %p581 = pneg %p236
        %p582 = pneg %p233
        %p583 = pneg %p257
        %p584 = pneg %p254
        %p585 = pneg %p278
        %p586 = pneg %p275
        %p587 = pneg %p299
        %p588 = pneg %p296
        %p589 = pneg %p320
        %p590 = pneg %p317
        %p591 = pneg %p341
        %p592 = pneg %p338
        %p593 = pneg %p362
        %p594 = pneg %p359
        %p595 = pneg %p388
        %p596 = pneg %p385
        %s597 = smul.u32 8, %s32
        %p598 = scmp.lt.s32.totalorder %s597, 15
        %s599 = scalar_select %p598, %s597, 15
        %s600 = smul.addr %s599, 8
        %s601 = scalar_lea.vmem %s15, %s600
        %s602 = smul.u32 8, %s32
        %p603 = scmp.lt.s32.totalorder %s602, 15
        %s604 = scalar_select %p603, %s602, 15
        %s605 = smul.addr %s604, 8
        %s606 = scalar_lea.vmem %s0, %s605
        %s607 = smul.u32 8, %s32
        %s608 = smul.u32 2, %s32
        %p609 = scmp.lt.s32.totalorder %s608, 3
        %s610 = scalar_select %p609, %s608, 3
        %s611 = smul.addr %s610, 8
        %s612 = scalar_lea.vmem %s1, %s611
        %s613 = smul.u32 2, %s32
        %s614 = smul.u32 2, %s32
        %s615 = smul.u32 2, %s32
        %s616 = smul.u32 8, %s32
        %p617 = scmp.lt.s32.totalorder %s616, 15
        %s618 = scalar_select %p617, %s616, 15
        %s619 = smul.addr %s618, 8
        %s620 = scalar_lea.vmem %s15, %s619
        %s621 = smul.u32 8, %s32
        %v623 = vld [vmem:[%s606] sm:$0xff]
        %v624 = vld [vmem:[%s606 + $0x8] sm:$0xff]
        %v625 = vld [vmem:[%s606 + $0x10] sm:$0xff]
        %v626 = vld [vmem:[%s606 + $0x18] sm:$0xff]
        %v627 = vld [vmem:[%s606 + $0x20] sm:$0xff]
        %v628 = vld [vmem:[%s606 + $0x28] sm:$0xff]
        %v629 = vld [vmem:[%s606 + $0x30] sm:$0xff]
        %v630 = vld [vmem:[%s606 + $0x38] sm:$0xff]
        %v631 = vpack.c.bf16 %v624, %v623
        %v632 = vpack.c.bf16 %v626, %v625
        %v633 = vpack.c.bf16 %v628, %v627
        %v634 = vpack.c.bf16 %v630, %v629
        %v635 = vld [vmem:[%s4] sm:$0x7]
        %v636 = vld [vmem:[%s5] sm:$0x1]
        %v638 = vperm.slane %v636, 0
        %vm640 = vcmask 48128
        %v642 = vsel %vm640, %v631, 0
        %v645 = vsel %vm640, %v632, 0
        %v648 = vsel %vm640, %v633, 0
        %v651 = vsel %vm640, %v634, 0
        %vm653 = vcmask 1042432
        %v655 = vsel %vm653, %v635, 0
        %657 = vmatpush.bf16.msra.mxu0 0
        %658 = vmatpush.bf16.msra.mxu0 0
        %659 = vmatpush.bf16.msra.mxu0 0
        %660 = vmatpush.bf16.msra.mxu0 0
        %661 = vmatpush.bf16.msra.mxu0 0
        %662 = vmatpush.bf16.msra.mxu0 0
        %663 = vmatpush.bf16.msra.mxu0 0
        %664 = vmatpush.bf16.msra.mxu0 %v655
        %665 = vmatmul.bf16.gmra.mxu0 %v642
        %v666 = vpop.f32.mrf.mxu0
        %v667 = vadd.f32 %v638, %v666
        %v668 = vpop.f32.mrf.mxu0
        %v669 = vadd.f32 %v638, %v668
        %670 = vmatmul.bf16.gmra.mxu0 %v645
        %v671 = vpop.f32.mrf.mxu0
        %v672 = vadd.f32 %v638, %v671
        %v673 = vpop.f32.mrf.mxu0
        %v674 = vadd.f32 %v638, %v673
        %675 = vmatmul.bf16.gmra.mxu0 %v648
        %v676 = vpop.f32.mrf.mxu0
        %v677 = vadd.f32 %v638, %v676
        %v678 = vpop.f32.mrf.mxu0
        %v679 = vadd.f32 %v638, %v678
        %680 = vmatmul.bf16.gmra.mxu0 %v651
        %v681 = vpop.f32.mrf.mxu0
        %v682 = vadd.f32 %v638, %v681
        %v683 = vpop.f32.mrf.mxu0
        %v684 = vadd.f32 %v638, %v683
        %685 = vdwg.mxu0
        %vm686 = vcmp.ge.f32.partialorder %v667, 0.0
        %vm687 = vcmp.ge.f32.partialorder %v669, 0.0
        %vm688 = vcmp.ge.f32.partialorder %v672, 0.0
        %vm689 = vcmp.ge.f32.partialorder %v674, 0.0
        %vm690 = vcmp.ge.f32.partialorder %v677, 0.0
        %vm691 = vcmp.ge.f32.partialorder %v679, 0.0
        %vm692 = vcmp.ge.f32.partialorder %v682, 0.0
        %vm693 = vcmp.ge.f32.partialorder %v684, 0.0
        %v694 = vmul.f32 %v667, 0.15
        %v695 = vmul.f32 %v669, 0.15
        %v696 = vmul.f32 %v672, 0.15
        %v697 = vmul.f32 %v674, 0.15
        %v698 = vmul.f32 %v677, 0.15
        %v699 = vmul.f32 %v679, 0.15
        %v700 = vmul.f32 %v682, 0.15
        %v701 = vmul.f32 %v684, 0.15
        %v702 = vsel %vm686, %v667, %v694
        %v703 = vsel %vm687, %v669, %v695
        %v704 = vsel %vm688, %v672, %v696
        %v705 = vsel %vm689, %v674, %v697
        %v706 = vsel %vm690, %v677, %v698
        %v707 = vsel %vm691, %v679, %v699
        %v708 = vsel %vm692, %v682, %v700
        %v709 = vsel %vm693, %v684, %v701
        %v710 = vpack.c.bf16 %v703, %v702
        %v711 = vpack.c.bf16 %v705, %v704
        %v712 = vpack.c.bf16 %v707, %v706
        %v713 = vpack.c.bf16 %v709, %v708
        %v714 = vld [vmem:[#allocation6] sm:$0xf]
        %v715 = vld [vmem:[#allocation6 + $0x4] sm:$0xf]
        %v716 = vld [vmem:[#allocation6 + $0x8] sm:$0xf]
        %v717 = vld [vmem:[#allocation6 + $0xc] sm:$0xf]
        %v718 = vld [vmem:[%s612] sm:$0xff]
        %v719 = vld [vmem:[%s612 + $0x8] sm:$0xff]
        %v720 = vunpack.c.0.s8 %v718
        %v721 = vunpack.c.1.s8 %v718
        %v722 = vunpack.c.2.s8 %v718
        %v723 = vunpack.c.3.s8 %v718
        %v724 = vunpack.c.0.s8 %v719
        %v725 = vunpack.c.1.s8 %v719
        %v726 = vunpack.c.2.s8 %v719
        %v727 = vunpack.c.3.s8 %v719
        %v728 = vcvt.s32.f32 %v720
        %v729 = vcvt.s32.f32 %v721
        %v730 = vcvt.s32.f32 %v722
        %v731 = vcvt.s32.f32 %v723
        %v732 = vcvt.s32.f32 %v724
        %v733 = vcvt.s32.f32 %v725
        %v734 = vcvt.s32.f32 %v726
        %v735 = vcvt.s32.f32 %v727
        %v736 = vpack.c.bf16 %v729, %v728
        %v737 = vpack.c.bf16 %v731, %v730
        %v738 = vpack.c.bf16 %v733, %v732
        %v739 = vpack.c.bf16 %v735, %v734
        %v740 = vld [vmem:[%s8] sm:$0xf]
        %v741 = vld [vmem:[%s8 + $0x4] sm:$0xf]
        %v742 = vld [vmem:[%s8 + $0x8] sm:$0xf]
        %v743 = vld [vmem:[%s8 + $0xc] sm:$0xf]
        %v744 = vld [vmem:[%s8 + $0x10] sm:$0xf]
        %v745 = vld [vmem:[%s8 + $0x14] sm:$0xf]
        %v746 = vld [vmem:[%s8 + $0x18] sm:$0xf]
        %v747 = vld [vmem:[%s8 + $0x1c] sm:$0xf]
        %v748 = vld [vmem:[%s8 + $0x20] sm:$0xf]
        %v749 = vld [vmem:[%s8 + $0x24] sm:$0xf]
        %v750 = vld [vmem:[%s8 + $0x28] sm:$0xf]
        %v751 = vld [vmem:[%s8 + $0x2c] sm:$0xf]
        %v752 = vld [vmem:[%s8 + $0x30] sm:$0xf]
        %v753 = vld [vmem:[%s8 + $0x34] sm:$0xf]
        %v754 = vld [vmem:[%s8 + $0x38] sm:$0xf]
        %v755 = vld [vmem:[%s8 + $0x3c] sm:$0x7]
        %v772 = vunpack.c.l.b16 %v740
        %v773 = vunpack.c.l.b16 %v741
        %v774 = vunpack.c.l.b16 %v742
        %v775 = vunpack.c.l.b16 %v743
        %v776 = vunpack.c.l.b16 %v744
        %v777 = vunpack.c.l.b16 %v745
        %v778 = vunpack.c.l.b16 %v746
        %v779 = vunpack.c.l.b16 %v747
        %v780 = vunpack.c.l.b16 %v748
        %v781 = vunpack.c.l.b16 %v749
        %v782 = vunpack.c.l.b16 %v750
        %v783 = vunpack.c.l.b16 %v751
        %v784 = vunpack.c.l.b16 %v752
        %v785 = vunpack.c.l.b16 %v753
        %v786 = vunpack.c.l.b16 %v754
        %v787 = vunpack.c.l.b16 %v755
        %v788 = vpack.c.b16 %v773, %v772
        %v789 = vpack.c.b16 %v775, %v774
        %v790 = vpack.c.b16 %v777, %v776
        %v791 = vpack.c.b16 %v779, %v778
        %v792 = vpack.c.b16 %v781, %v780
        %v793 = vpack.c.b16 %v783, %v782
        %v794 = vpack.c.b16 %v785, %v784
        %v795 = vpack.c.b16 %v787, %v786
        %vm803 = vcmask 1022976
        %v805 = vsel %vm803, %v736, 0
        %v808 = vsel %vm803, %v737, 0
        %v811 = vsel %vm803, %v738, 0
        %v814 = vsel %vm803, %v739, 0
        %vm816 = vcmask 1045504
        %vm817 = vcmask 1046528
        %v818 = vsel %vm816, 4294967295, 65535
        %v819 = vsel %vm817, %v818, 0
        %v821 = vand.u32 %v795, %v819
        %823 = vmatpush.bf16.msra.mxu0 %v821
        %824 = vmatpush.bf16.msra.mxu0 %v794
        %825 = vmatpush.bf16.msra.mxu0 %v793
        %826 = vmatpush.bf16.msra.mxu0 %v792
        %827 = vmatpush.bf16.msra.mxu0 %v791
        %828 = vmatpush.bf16.msra.mxu0 %v790
        %829 = vmatpush.bf16.msra.mxu0 %v789
        %830 = vmatpush.bf16.msra.mxu0 %v788
        %831 = vmatmul.bf16.gmra.mxu0 %v805
        %v832 = vpop.f32.mrf.mxu0
        %v833 = vadd.f32 0.0, %v832
        %v834 = vpop.f32.mrf.mxu0
        %v835 = vadd.f32 0.0, %v834
        %836 = vmatmul.bf16.gmra.mxu0 %v808
        %v837 = vpop.f32.mrf.mxu0
        %v838 = vadd.f32 0.0, %v837
        %v839 = vpop.f32.mrf.mxu0
        %v840 = vadd.f32 0.0, %v839
        %841 = vmatmul.bf16.gmra.mxu0 %v811
        %v842 = vpop.f32.mrf.mxu0
        %v843 = vadd.f32 0.0, %v842
        %v844 = vpop.f32.mrf.mxu0
        %v845 = vadd.f32 0.0, %v844
        %846 = vmatmul.bf16.gmra.mxu0 %v814
        %v847 = vpop.f32.mrf.mxu0
        %v848 = vadd.f32 0.0, %v847
        %v849 = vpop.f32.mrf.mxu0
        %v850 = vadd.f32 0.0, %v849
        %851 = vdwg.mxu0
        %v856 = vunpack.c.l.b16 %v714
        %v857 = vunpack.c.l.b16 %v715
        %v858 = vunpack.c.l.b16 %v716
        %v859 = vunpack.c.l.b16 %v717
        %v860 = vpack.c.b16 %v857, %v856
        %v861 = vpack.c.b16 %v859, %v858
        %vm864 = vcmask 261120
        %v866 = vsel %vm864, %v710, 0
        %v869 = vsel %vm864, %v711, 0
        %v872 = vsel %vm864, %v712, 0
        %v875 = vsel %vm864, %v713, 0
        %877 = vmatpush.bf16.msra.mxu0 0
        %878 = vmatpush.bf16.msra.mxu0 0
        %879 = vmatpush.bf16.msra.mxu0 0
        %880 = vmatpush.bf16.msra.mxu0 0
        %881 = vmatpush.bf16.msra.mxu0 0
        %882 = vmatpush.bf16.msra.mxu0 0
        %883 = vmatpush.bf16.msra.mxu0 %v861
        %884 = vmatpush.bf16.msra.mxu0 %v860
        %885 = vmatmul.bf16.gmra.mxu0 %v866
        %v886 = vpop.f32.mrf.mxu0
        %v887 = vadd.f32 %v833, %v886
        %v888 = vpop.f32.mrf.mxu0
        %v889 = vadd.f32 %v835, %v888
        %890 = vmatmul.bf16.gmra.mxu0 %v869
        %v891 = vpop.f32.mrf.mxu0
        %v892 = vadd.f32 %v838, %v891
        %v893 = vpop.f32.mrf.mxu0
        %v894 = vadd.f32 %v840, %v893
        %895 = vmatmul.bf16.gmra.mxu0 %v872
        %v896 = vpop.f32.mrf.mxu0
        %v897 = vadd.f32 %v843, %v896
        %v898 = vpop.f32.mrf.mxu0
        %v899 = vadd.f32 %v845, %v898
        %900 = vmatmul.bf16.gmra.mxu0 %v875
        %v901 = vpop.f32.mrf.mxu0
        %v902 = vadd.f32 %v848, %v901
        %v903 = vpop.f32.mrf.mxu0
        %v904 = vadd.f32 %v850, %v903
        %905 = vdwg.mxu0
        %v906 = vld [vmem:[%s524] sm:$0xff]
        %v907 = vld [vmem:[%s524 + $0x8] sm:$0xff]
        %v908 = vunpack.c.0.s8 %v906
        %v909 = vunpack.c.1.s8 %v906
        %v910 = vunpack.c.2.s8 %v906
        %v911 = vunpack.c.3.s8 %v906
        %v912 = vunpack.c.0.s8 %v907
        %v913 = vunpack.c.1.s8 %v907
        %v914 = vunpack.c.2.s8 %v907
        %v915 = vunpack.c.3.s8 %v907
        %v916 = vcvt.s32.f32 %v908
        %v917 = vcvt.s32.f32 %v909
        %v918 = vcvt.s32.f32 %v910
        %v919 = vcvt.s32.f32 %v911
        %v920 = vcvt.s32.f32 %v912
        %v921 = vcvt.s32.f32 %v913
        %v922 = vcvt.s32.f32 %v914
        %v923 = vcvt.s32.f32 %v915
        %v924 = vpack.c.bf16 %v917, %v916
        %v925 = vpack.c.bf16 %v919, %v918
        %v926 = vpack.c.bf16 %v921, %v920
        %v927 = vpack.c.bf16 %v923, %v922
        %v928 = vld [vmem:[%s9] sm:$0xf]
        %v929 = vld [vmem:[%s9 + $0x4] sm:$0xf]
        %v930 = vld [vmem:[%s9 + $0x8] sm:$0xf]
        %v931 = vld [vmem:[%s9 + $0xc] sm:$0xf]
        %v932 = vld [vmem:[%s9 + $0x10] sm:$0xf]
        %v933 = vld [vmem:[%s9 + $0x14] sm:$0xf]
        %v934 = vld [vmem:[%s9 + $0x18] sm:$0xf]
        %v935 = vld [vmem:[%s9 + $0x1c] sm:$0xf]
        %v936 = vld [vmem:[%s9 + $0x20] sm:$0xf]
        %v937 = vld [vmem:[%s9 + $0x24] sm:$0xf]
        %v938 = vld [vmem:[%s9 + $0x28] sm:$0xf]
        %v939 = vld [vmem:[%s9 + $0x2c] sm:$0xf]
        %v940 = vld [vmem:[%s9 + $0x30] sm:$0xf]
        %v941 = vld [vmem:[%s9 + $0x34] sm:$0xf]
        %v942 = vld [vmem:[%s9 + $0x38] sm:$0xf]
        %v943 = vld [vmem:[%s9 + $0x3c] sm:$0x7]
        %v960 = vunpack.c.l.b16 %v928
        %v961 = vunpack.c.l.b16 %v929
        %v962 = vunpack.c.l.b16 %v930
        %v963 = vunpack.c.l.b16 %v931
        %v964 = vunpack.c.l.b16 %v932
        %v965 = vunpack.c.l.b16 %v933
        %v966 = vunpack.c.l.b16 %v934
        %v967 = vunpack.c.l.b16 %v935
        %v968 = vunpack.c.l.b16 %v936
        %v969 = vunpack.c.l.b16 %v937
        %v970 = vunpack.c.l.b16 %v938
        %v971 = vunpack.c.l.b16 %v939
        %v972 = vunpack.c.l.b16 %v940
        %v973 = vunpack.c.l.b16 %v941
        %v974 = vunpack.c.l.b16 %v942
        %v975 = vunpack.c.l.b16 %v943
        %v976 = vpack.c.b16 %v961, %v960
        %v977 = vpack.c.b16 %v963, %v962
        %v978 = vpack.c.b16 %v965, %v964
        %v979 = vpack.c.b16 %v967, %v966
        %v980 = vpack.c.b16 %v969, %v968
        %v981 = vpack.c.b16 %v971, %v970
        %v982 = vpack.c.b16 %v973, %v972
        %v983 = vpack.c.b16 %v975, %v974
        %v992 = vsel %vm803, %v924, 0
        %v995 = vsel %vm803, %v925, 0
        %v998 = vsel %vm803, %v926, 0
        %v1001 = vsel %vm803, %v927, 0
        %v1004 = vand.u32 %v983, %v819
        %1006 = vmatpush.bf16.msra.mxu0 %v1004
        %1007 = vmatpush.bf16.msra.mxu0 %v982
        %1008 = vmatpush.bf16.msra.mxu0 %v981
        %1009 = vmatpush.bf16.msra.mxu0 %v980
        %1010 = vmatpush.bf16.msra.mxu0 %v979
        %1011 = vmatpush.bf16.msra.mxu0 %v978
        %1012 = vmatpush.bf16.msra.mxu0 %v977
        %1013 = vmatpush.bf16.msra.mxu0 %v976
        %1014 = vmatmul.bf16.gmra.mxu0 %v992
        %v1015 = vpop.f32.mrf.mxu0
        %v1016 = vadd.f32 0.0, %v1015
        %v1017 = vpop.f32.mrf.mxu0
        %v1018 = vadd.f32 0.0, %v1017
        %1019 = vmatmul.bf16.gmra.mxu0 %v995
        %v1020 = vpop.f32.mrf.mxu0
        %v1021 = vadd.f32 0.0, %v1020
        %v1022 = vpop.f32.mrf.mxu0
        %v1023 = vadd.f32 0.0, %v1022
        %1024 = vmatmul.bf16.gmra.mxu0 %v998
        %v1025 = vpop.f32.mrf.mxu0
        %v1026 = vadd.f32 0.0, %v1025
        %v1027 = vpop.f32.mrf.mxu0
        %v1028 = vadd.f32 0.0, %v1027
        %1029 = vmatmul.bf16.gmra.mxu0 %v1001
        %v1030 = vpop.f32.mrf.mxu0
        %v1031 = vadd.f32 0.0, %v1030
        %v1032 = vpop.f32.mrf.mxu0
        %v1033 = vadd.f32 0.0, %v1032
        %1034 = vdwg.mxu0
        %v1035 = vadd.f32 %v887, %v1016
        %v1036 = vadd.f32 %v889, %v1018
        %v1037 = vadd.f32 %v892, %v1021
        %v1038 = vadd.f32 %v894, %v1023
        %v1039 = vadd.f32 %v897, %v1026
        %v1040 = vadd.f32 %v899, %v1028
        %v1041 = vadd.f32 %v902, %v1031
        %v1042 = vadd.f32 %v904, %v1033
        %v1043 = vld [vmem:[%s534] sm:$0xff]
        %v1044 = vld [vmem:[%s534 + $0x8] sm:$0xff]
        %v1045 = vunpack.c.0.s8 %v1043
        %v1046 = vunpack.c.1.s8 %v1043
        %v1047 = vunpack.c.2.s8 %v1043
        %v1048 = vunpack.c.3.s8 %v1043
        %v1049 = vunpack.c.0.s8 %v1044
        %v1050 = vunpack.c.1.s8 %v1044
        %v1051 = vunpack.c.2.s8 %v1044
        %v1052 = vunpack.c.3.s8 %v1044
        %v1053 = vcvt.s32.f32 %v1045
        %v1054 = vcvt.s32.f32 %v1046
        %v1055 = vcvt.s32.f32 %v1047
        %v1056 = vcvt.s32.f32 %v1048
        %v1057 = vcvt.s32.f32 %v1049
        %v1058 = vcvt.s32.f32 %v1050
        %v1059 = vcvt.s32.f32 %v1051
        %v1060 = vcvt.s32.f32 %v1052
        %v1061 = vpack.c.bf16 %v1054, %v1053
        %v1062 = vpack.c.bf16 %v1056, %v1055
        %v1063 = vpack.c.bf16 %v1058, %v1057
        %v1064 = vpack.c.bf16 %v1060, %v1059
        %v1065 = vld [vmem:[%s10] sm:$0xf]
        %v1066 = vld [vmem:[%s10 + $0x4] sm:$0xf]
        %v1067 = vld [vmem:[%s10 + $0x8] sm:$0xf]
        %v1068 = vld [vmem:[%s10 + $0xc] sm:$0xf]
        %v1069 = vld [vmem:[%s10 + $0x10] sm:$0xf]
        %v1070 = vld [vmem:[%s10 + $0x14] sm:$0xf]
        %v1071 = vld [vmem:[%s10 + $0x18] sm:$0xf]
        %v1072 = vld [vmem:[%s10 + $0x1c] sm:$0xf]
        %v1073 = vld [vmem:[%s10 + $0x20] sm:$0xf]
        %v1074 = vld [vmem:[%s10 + $0x24] sm:$0xf]
        %v1075 = vld [vmem:[%s10 + $0x28] sm:$0xf]
        %v1076 = vld [vmem:[%s10 + $0x2c] sm:$0xf]
        %v1077 = vld [vmem:[%s10 + $0x30] sm:$0xf]
        %v1078 = vld [vmem:[%s10 + $0x34] sm:$0xf]
        %v1079 = vld [vmem:[%s10 + $0x38] sm:$0xf]
        %v1080 = vld [vmem:[%s10 + $0x3c] sm:$0x7]
        %v1097 = vunpack.c.l.b16 %v1065
        %v1098 = vunpack.c.l.b16 %v1066
        %v1099 = vunpack.c.l.b16 %v1067
        %v1100 = vunpack.c.l.b16 %v1068
        %v1101 = vunpack.c.l.b16 %v1069
        %v1102 = vunpack.c.l.b16 %v1070
        %v1103 = vunpack.c.l.b16 %v1071
        %v1104 = vunpack.c.l.b16 %v1072
        %v1105 = vunpack.c.l.b16 %v1073
        %v1106 = vunpack.c.l.b16 %v1074
        %v1107 = vunpack.c.l.b16 %v1075
        %v1108 = vunpack.c.l.b16 %v1076
        %v1109 = vunpack.c.l.b16 %v1077
        %v1110 = vunpack.c.l.b16 %v1078
        %v1111 = vunpack.c.l.b16 %v1079
        %v1112 = vunpack.c.l.b16 %v1080
        %v1113 = vpack.c.b16 %v1098, %v1097
        %v1114 = vpack.c.b16 %v1100, %v1099
        %v1115 = vpack.c.b16 %v1102, %v1101
        %v1116 = vpack.c.b16 %v1104, %v1103
        %v1117 = vpack.c.b16 %v1106, %v1105
        %v1118 = vpack.c.b16 %v1108, %v1107
        %v1119 = vpack.c.b16 %v1110, %v1109
        %v1120 = vpack.c.b16 %v1112, %v1111
        %v1129 = vsel %vm803, %v1061, 0
        %v1132 = vsel %vm803, %v1062, 0
        %v1135 = vsel %vm803, %v1063, 0
        %v1138 = vsel %vm803, %v1064, 0
        %v1141 = vand.u32 %v1120, %v819
        %1143 = vmatpush.bf16.msra.mxu0 %v1141
        %1144 = vmatpush.bf16.msra.mxu0 %v1119
        %1145 = vmatpush.bf16.msra.mxu0 %v1118
        %1146 = vmatpush.bf16.msra.mxu0 %v1117
        %1147 = vmatpush.bf16.msra.mxu0 %v1116
        %1148 = vmatpush.bf16.msra.mxu0 %v1115
        %1149 = vmatpush.bf16.msra.mxu0 %v1114
        %1150 = vmatpush.bf16.msra.mxu0 %v1113
        %1151 = vmatmul.bf16.gmra.mxu0 %v1129
        %v1152 = vpop.f32.mrf.mxu0
        %v1153 = vadd.f32 0.0, %v1152
        %v1154 = vpop.f32.mrf.mxu0
        %v1155 = vadd.f32 0.0, %v1154
        %1156 = vmatmul.bf16.gmra.mxu0 %v1132
        %v1157 = vpop.f32.mrf.mxu0
        %v1158 = vadd.f32 0.0, %v1157
        %v1159 = vpop.f32.mrf.mxu0
        %v1160 = vadd.f32 0.0, %v1159
        %1161 = vmatmul.bf16.gmra.mxu0 %v1135
        %v1162 = vpop.f32.mrf.mxu0
        %v1163 = vadd.f32 0.0, %v1162
        %v1164 = vpop.f32.mrf.mxu0
        %v1165 = vadd.f32 0.0, %v1164
        %1166 = vmatmul.bf16.gmra.mxu0 %v1138
        %v1167 = vpop.f32.mrf.mxu0
        %v1168 = vadd.f32 0.0, %v1167
        %v1169 = vpop.f32.mrf.mxu0
        %v1170 = vadd.f32 0.0, %v1169
        %1171 = vdwg.mxu0
        %v1172 = vadd.f32 %v1035, %v1153
        %v1173 = vadd.f32 %v1036, %v1155
        %v1174 = vadd.f32 %v1037, %v1158
        %v1175 = vadd.f32 %v1038, %v1160
        %v1176 = vadd.f32 %v1039, %v1163
        %v1177 = vadd.f32 %v1040, %v1165
        %v1178 = vadd.f32 %v1041, %v1168
        %v1179 = vadd.f32 %v1042, %v1170
        %v1180 = vld [vmem:[%s7] sm:$0x1]
        %v1182 = vperm.slane %v1180, 0
        %v1184 = vadd.f32 %v1172, %v1182
        %v1185 = vadd.f32 %v1173, %v1182
        %v1186 = vadd.f32 %v1174, %v1182
        %v1187 = vadd.f32 %v1175, %v1182
        %v1188 = vadd.f32 %v1176, %v1182
        %v1189 = vadd.f32 %v1177, %v1182
        %v1190 = vadd.f32 %v1178, %v1182
        %v1191 = vadd.f32 %v1179, %v1182
        %vm1192 = vcmp.ge.f32.partialorder %v1184, 0.0
        %vm1193 = vcmp.ge.f32.partialorder %v1185, 0.0
        %vm1194 = vcmp.ge.f32.partialorder %v1186, 0.0
        %vm1195 = vcmp.ge.f32.partialorder %v1187, 0.0
        %vm1196 = vcmp.ge.f32.partialorder %v1188, 0.0
        %vm1197 = vcmp.ge.f32.partialorder %v1189, 0.0
        %vm1198 = vcmp.ge.f32.partialorder %v1190, 0.0
        %vm1199 = vcmp.ge.f32.partialorder %v1191, 0.0
        %v1200 = vmul.f32 %v1184, 0.15
        %v1201 = vmul.f32 %v1185, 0.15
        %v1202 = vmul.f32 %v1186, 0.15
        %v1203 = vmul.f32 %v1187, 0.15
        %v1204 = vmul.f32 %v1188, 0.15
        %v1205 = vmul.f32 %v1189, 0.15
        %v1206 = vmul.f32 %v1190, 0.15
        %v1207 = vmul.f32 %v1191, 0.15
        %v1208 = vsel %vm1192, %v1184, %v1200
        %v1209 = vsel %vm1193, %v1185, %v1201
        %v1210 = vsel %vm1194, %v1186, %v1202
        %v1211 = vsel %vm1195, %v1187, %v1203
        %v1212 = vsel %vm1196, %v1188, %v1204
        %v1213 = vsel %vm1197, %v1189, %v1205
        %v1214 = vsel %vm1198, %v1190, %v1206
        %v1215 = vsel %vm1199, %v1191, %v1207
        %v1216 = vpack.c.bf16 %v1209, %v1208
        %v1217 = vpack.c.bf16 %v1211, %v1210
        %v1218 = vpack.c.bf16 %v1213, %v1212
        %v1219 = vpack.c.bf16 %v1215, %v1214
        %v1220 = vld [vmem:[%s11] sm:$0xf]
        %v1221 = vld [vmem:[%s11 + $0x4] sm:$0xf]
        %v1222 = vld [vmem:[%s11 + $0x8] sm:$0xf]
        %v1223 = vld [vmem:[%s11 + $0xc] sm:$0xf]
        %v1224 = vld [vmem:[%s11 + $0x10] sm:$0xf]
        %v1225 = vld [vmem:[%s11 + $0x14] sm:$0xf]
        %v1226 = vld [vmem:[%s11 + $0x18] sm:$0xf]
        %v1227 = vld [vmem:[%s11 + $0x1c] sm:$0xf]
        %v1228 = vld [vmem:[%s11 + $0x20] sm:$0xf]
        %v1229 = vld [vmem:[%s11 + $0x24] sm:$0xf]
        %v1230 = vld [vmem:[%s11 + $0x28] sm:$0xf]
        %v1231 = vld [vmem:[%s11 + $0x2c] sm:$0xf]
        %v1232 = vld [vmem:[%s11 + $0x30] sm:$0xf]
        %v1233 = vld [vmem:[%s11 + $0x34] sm:$0xf]
        %v1234 = vld [vmem:[%s11 + $0x38] sm:$0xf]
        %v1235 = vld [vmem:[%s11 + $0x3c] sm:$0xf]
        %v1236 = vld [vmem:[%s12] sm:$0x1]
        %v1238 = vperm.slane %v1236, 0
        %v1256 = vunpack.c.l.b16 %v1220
        %v1257 = vunpack.c.l.b16 %v1221
        %v1258 = vunpack.c.l.b16 %v1222
        %v1259 = vunpack.c.l.b16 %v1223
        %v1260 = vunpack.c.l.b16 %v1224
        %v1261 = vunpack.c.l.b16 %v1225
        %v1262 = vunpack.c.l.b16 %v1226
        %v1263 = vunpack.c.l.b16 %v1227
        %v1264 = vunpack.c.l.b16 %v1228
        %v1265 = vunpack.c.l.b16 %v1229
        %v1266 = vunpack.c.l.b16 %v1230
        %v1267 = vunpack.c.l.b16 %v1231
        %v1268 = vunpack.c.l.b16 %v1232
        %v1269 = vunpack.c.l.b16 %v1233
        %v1270 = vunpack.c.l.b16 %v1234
        %v1271 = vunpack.c.l.b16 %v1235
        %v1272 = vpack.c.b16 %v1257, %v1256
        %v1273 = vpack.c.b16 %v1259, %v1258
        %v1274 = vpack.c.b16 %v1261, %v1260
        %v1275 = vpack.c.b16 %v1263, %v1262
        %v1276 = vpack.c.b16 %v1265, %v1264
        %v1277 = vpack.c.b16 %v1267, %v1266
        %v1278 = vpack.c.b16 %v1269, %v1268
        %v1279 = vpack.c.b16 %v1271, %v1270
        %1288 = vmatpush.bf16.msra.mxu0 %v1279
        %1289 = vmatpush.bf16.msra.mxu0 %v1278
        %1290 = vmatpush.bf16.msra.mxu0 %v1277
        %1291 = vmatpush.bf16.msra.mxu0 %v1276
        %1292 = vmatpush.bf16.msra.mxu0 %v1275
        %1293 = vmatpush.bf16.msra.mxu0 %v1274
        %1294 = vmatpush.bf16.msra.mxu0 %v1273
        %1295 = vmatpush.bf16.msra.mxu0 %v1272
        %1296 = vmatmul.bf16.gmra.mxu0 %v1216
        %v1297 = vpop.f32.mrf.mxu0
        %v1298 = vadd.f32 %v1238, %v1297
        %v1299 = vpop.f32.mrf.mxu0
        %v1300 = vadd.f32 %v1238, %v1299
        %1301 = vmatmul.bf16.gmra.mxu0 %v1217
        %v1302 = vpop.f32.mrf.mxu0
        %v1303 = vadd.f32 %v1238, %v1302
        %v1304 = vpop.f32.mrf.mxu0
        %v1305 = vadd.f32 %v1238, %v1304
        %1306 = vmatmul.bf16.gmra.mxu0 %v1218
        %v1307 = vpop.f32.mrf.mxu0
        %v1308 = vadd.f32 %v1238, %v1307
        %v1309 = vpop.f32.mrf.mxu0
        %v1310 = vadd.f32 %v1238, %v1309
        %1311 = vmatmul.bf16.gmra.mxu0 %v1219
        %v1312 = vpop.f32.mrf.mxu0
        %v1313 = vadd.f32 %v1238, %v1312
        %v1314 = vpop.f32.mrf.mxu0
        %v1315 = vadd.f32 %v1238, %v1314
        %1316 = vdwg.mxu0
        %vm1317 = vcmp.ge.f32.partialorder %v1298, 0.0
        %vm1318 = vcmp.ge.f32.partialorder %v1300, 0.0
        %vm1319 = vcmp.ge.f32.partialorder %v1303, 0.0
        %vm1320 = vcmp.ge.f32.partialorder %v1305, 0.0
        %vm1321 = vcmp.ge.f32.partialorder %v1308, 0.0
        %vm1322 = vcmp.ge.f32.partialorder %v1310, 0.0
        %vm1323 = vcmp.ge.f32.partialorder %v1313, 0.0
        %vm1324 = vcmp.ge.f32.partialorder %v1315, 0.0
        %v1325 = vmul.f32 %v1298, 0.15
        %v1326 = vmul.f32 %v1300, 0.15
        %v1327 = vmul.f32 %v1303, 0.15
        %v1328 = vmul.f32 %v1305, 0.15
        %v1329 = vmul.f32 %v1308, 0.15
        %v1330 = vmul.f32 %v1310, 0.15
        %v1331 = vmul.f32 %v1313, 0.15
        %v1332 = vmul.f32 %v1315, 0.15
        %v1333 = vsel %vm1317, %v1298, %v1325
        %v1334 = vsel %vm1318, %v1300, %v1326
        %v1335 = vsel %vm1319, %v1303, %v1327
        %v1336 = vsel %vm1320, %v1305, %v1328
        %v1337 = vsel %vm1321, %v1308, %v1329
        %v1338 = vsel %vm1322, %v1310, %v1330
        %v1339 = vsel %vm1323, %v1313, %v1331
        %v1340 = vsel %vm1324, %v1315, %v1332
        %v1341 = vpack.c.bf16 %v1334, %v1333
        %v1342 = vpack.c.bf16 %v1336, %v1335
        %v1343 = vpack.c.bf16 %v1338, %v1337
        %v1344 = vpack.c.bf16 %v1340, %v1339
        %v1345 = vld [vmem:[%s13] sm:$0xf]
        %v1346 = vld [vmem:[%s13 + $0x4] sm:$0xf]
        %v1347 = vld [vmem:[%s13 + $0x8] sm:$0xf]
        %v1348 = vld [vmem:[%s13 + $0xc] sm:$0xf]
        %v1349 = vld [vmem:[%s13 + $0x10] sm:$0xf]
        %v1350 = vld [vmem:[%s13 + $0x14] sm:$0xf]
        %v1351 = vld [vmem:[%s13 + $0x18] sm:$0xf]
        %v1352 = vld [vmem:[%s13 + $0x1c] sm:$0xf]
        %v1353 = vld [vmem:[%s14] sm:$0x1]
        %v1355 = vperm.slane %v1353, 0
        %v1365 = vunpack.c.l.b16 %v1345
        %v1366 = vunpack.c.l.b16 %v1346
        %v1367 = vunpack.c.l.b16 %v1347
        %v1368 = vunpack.c.l.b16 %v1348
        %v1369 = vunpack.c.l.b16 %v1349
        %v1370 = vunpack.c.l.b16 %v1350
        %v1371 = vunpack.c.l.b16 %v1351
        %v1372 = vunpack.c.l.b16 %v1352
        %v1373 = vpack.c.b16 %v1366, %v1365
        %v1374 = vpack.c.b16 %v1368, %v1367
        %v1375 = vpack.c.b16 %v1370, %v1369
        %v1376 = vpack.c.b16 %v1372, %v1371
        %vm1381 = vcmask 523264
        %v1383 = vsel %vm1381, %v1341, 0
        %v1386 = vsel %vm1381, %v1342, 0
        %v1389 = vsel %vm1381, %v1343, 0
        %v1392 = vsel %vm1381, %v1344, 0
        %1394 = vmatpush.bf16.msra.mxu0 0
        %1395 = vmatpush.bf16.msra.mxu0 0
        %1396 = vmatpush.bf16.msra.mxu0 0
        %1397 = vmatpush.bf16.msra.mxu0 0
        %1398 = vmatpush.bf16.msra.mxu0 %v1376
        %1399 = vmatpush.bf16.msra.mxu0 %v1375
        %1400 = vmatpush.bf16.msra.mxu0 %v1374
        %1401 = vmatpush.bf16.msra.mxu0 %v1373
        %1402 = vmatmul.bf16.gmra.mxu0 %v1383
        %v1403 = vpop.f32.mrf.mxu0
        %v1404 = vadd.f32 %v1355, %v1403
        %v1405 = vpop.f32.mrf.mxu0
        %v1406 = vadd.f32 %v1355, %v1405
        %1407 = vmatmul.bf16.gmra.mxu0 %v1386
        %v1408 = vpop.f32.mrf.mxu0
        %v1409 = vadd.f32 %v1355, %v1408
        %v1410 = vpop.f32.mrf.mxu0
        %v1411 = vadd.f32 %v1355, %v1410
        %1412 = vmatmul.bf16.gmra.mxu0 %v1389
        %v1413 = vpop.f32.mrf.mxu0
        %v1414 = vadd.f32 %v1355, %v1413
        %v1415 = vpop.f32.mrf.mxu0
        %v1416 = vadd.f32 %v1355, %v1415
        %1417 = vmatmul.bf16.gmra.mxu0 %v1392
        %v1418 = vpop.f32.mrf.mxu0
        %v1419 = vadd.f32 %v1355, %v1418
        %v1420 = vpop.f32.mrf.mxu0
        %v1421 = vadd.f32 %v1355, %v1420
        %1422 = vdwg.mxu0
        %v1423 = vtanh.pop %v1404
        %v1424 = vtanh.pop %v1406
        %v1425 = vtanh.pop %v1409
        %v1426 = vtanh.pop %v1411
        %v1427 = vtanh.pop %v1414
        %v1428 = vtanh.pop %v1416
        %v1429 = vtanh.pop %v1419
        %v1430 = vtanh.pop %v1421
        %v1431 = vmul.f32 %v1423, 0.1
        %v1432 = vmul.f32 %v1424, 0.1
        %v1433 = vmul.f32 %v1425, 0.1
        %v1434 = vmul.f32 %v1426, 0.1
        %v1435 = vmul.f32 %v1427, 0.1
        %v1436 = vmul.f32 %v1428, 0.1
        %v1437 = vmul.f32 %v1429, 0.1
        %v1438 = vmul.f32 %v1430, 0.1
        %v1439 = vadd.f32 %v623, %v1431
        %v1440 = vadd.f32 %v624, %v1432
        %v1441 = vadd.f32 %v625, %v1433
        %v1442 = vadd.f32 %v626, %v1434
        %v1443 = vadd.f32 %v627, %v1435
        %v1444 = vadd.f32 %v628, %v1436
        %v1445 = vadd.f32 %v629, %v1437
        %v1446 = vadd.f32 %v630, %v1438
        %vm1447 = vcmask 23552
        %1448 = vst.msk [vmem:[%s620] sm:$0xff] %vm1447, %v1439
        %1449 = vst.msk [vmem:[%s620 + $0x8] sm:$0xff] %vm1447, %v1440
        %1450 = vst.msk [vmem:[%s620 + $0x10] sm:$0xff] %vm1447, %v1441
        %1451 = vst.msk [vmem:[%s620 + $0x18] sm:$0xff] %vm1447, %v1442
        %1452 = vst.msk [vmem:[%s620 + $0x20] sm:$0xff] %vm1447, %v1443
        %1453 = vst.msk [vmem:[%s620 + $0x28] sm:$0xff] %vm1447, %v1444
        %1454 = vst.msk [vmem:[%s620 + $0x30] sm:$0xff] %vm1447, %v1445
        %1455 = vst.msk [vmem:[%s620 + $0x38] sm:$0xff] %vm1447, %v1446
        %s1456 = smul.u32 8, %s32
        %p1457 = scmp.lt.s32.totalorder %s1456, 15
        %s1458 = scalar_select %p1457, %s1456, 15
        %s1459 = smul.addr %s1458, 8
        %s1460 = scalar_lea.vmem %s15, %s1459
        // Predicated region
        $region93: #{tpu_custom_call.1} parent=79 // pred_check
          %p1461 = pneg %p385
        $region94: #{tpu_custom_call.1} parent=79 // pred_check_branch
          %1463 = sbr.rel (%p1461) target = $region96
        $region95: #{tpu_custom_call.1} parent=79 // pred_region
          %s1464 = smul.u32 8, %s32
        $region96: #{tpu_custom_call.1} parent=79 // pred_fallthru
          _
      $region80: #{tpu_custom_call.1} parent=5 // pred_fallthru
        _
      %p1465 = scmp.le.s32.totalorder 2, %s27
      // Predicated region
      $region97: #{tpu_custom_call.1} parent=5 // pred_check
        %p1466 = pneg %p1465
      $region98: #{tpu_custom_call.1} parent=5 // pred_check_branch
        %1468 = sbr.rel (%p1466) target = $region100
      $region99: #{tpu_custom_call.1} parent=5 // pred_region
        %s1469 = ssub.s32 %s27, 2
        // Predicated region
        $region101: #{tpu_custom_call.1} parent=99 // pred_check
          %p1470 = pneg %p391
        $region102: #{tpu_custom_call.1} parent=99 // pred_check_branch
          %1472 = sbr.rel (%p1470) target = $region104
        $region103: #{tpu_custom_call.1} parent=99 // pred_region
          %s1473 = smul.u32 8, %s33
          %p1474 = scmp.lt.s32.totalorder %s1473, 15
          %s1475 = scalar_select %p1474, %s1473, 15
          %s1476 = smul.addr %s1475, 8
          %s1477 = scalar_lea.vmem %s15, %s1476
        $region104: #{tpu_custom_call.1} parent=99 // pred_fallthru
          _
      $region100: #{tpu_custom_call.1} parent=5 // pred_fallthru
        _
    $region6: #{tpu_custom_call.1} parent=1 // loop_footer
      %s31 = sadd.s32 1, %s27
    $region7: #{tpu_custom_call.1} parent=1 // loop_footer_branch
      %26 = sbr.rel target = $region3
    $region8: #{tpu_custom_call.1} parent=1 // loop_exit
      _
    %1478 = vsyncpa [#allocation3], 1
    %s1479 = scalar_lea.sflag [#allocation3], 1
    %1480 = vsyncpa %s1479, 1
    %1481 = vsyncpa [#allocation5], 1
    %s1482 = scalar_lea.sflag [#allocation5], 1
    %1483 = vsyncpa %s1482, 1

</llo_original>
